<compile_context>
chip_gen: v7x
topology: tpu7x:2x2x1
jax: 0.10.0
libtpu: 0.0.40
codegen_flags: <defaults>
</compile_context>

<pallas_src>
import jax
import jax.numpy as jnp
from jax import lax
from jax.experimental import pallas as pl
from jax.experimental.pallas import tpu as pltpu


def lstm_kernel(x_ref, wih_ref, whh_ref, b_ref, wout_ref, bout_ref,
                h0_ref, c0_ref,
                out_ref, hn_ref, cn_ref,
                gx_ref, hs_ref):
    seq_len = x_ref.shape[0]
    H = h0_ref.shape[1]

    # ---- Hoisted input projection: one (seq_len, I) @ (I, 4H) matmul. ----
    gx_ref[...] = (jnp.dot(x_ref[...], wih_ref[...],
                           preferred_element_type=jnp.float32)
                   + b_ref[...])

    def sigmoid(z):
        # tanh-form sigmoid: stays on the EUP, no divide, no inf intermediate.
        return 0.5 * (jnp.tanh(0.5 * z) + 1.0)

    # ---- Serial recurrence: only h @ W_hh^T + gate nonlinearities per step. ----
    def step(t, carry):
        h, c = carry                                       # (1, H), (1, H)
        gates = (gx_ref[pl.ds(t, 1), :]
                 + jnp.dot(h, whh_ref[...],
                           preferred_element_type=jnp.float32))   # (1, 4H)
        # Gate packing is [i, f, o, g]: sigmoid over one contiguous 3H slab.
        sg = sigmoid(gates[:, 0:3 * H])
        i_g = sg[:, 0 * H:1 * H]
        f_g = sg[:, 1 * H:2 * H]
        o_g = sg[:, 2 * H:3 * H]
        g_g = jnp.tanh(gates[:, 3 * H:4 * H])
        c_new = f_g * c + i_g * g_g
        h_new = o_g * jnp.tanh(c_new)
        hs_ref[pl.ds(t, 1), :] = h_new                     # stash h_t for epilogue
        return h_new, c_new

    h_fin, c_fin = lax.fori_loop(0, seq_len, step,
                                 (h0_ref[...], c0_ref[...]),
                                 unroll=True)
    hn_ref[...] = h_fin
    cn_ref[...] = c_fin

    # ---- Hoisted output Linear + LogSoftmax over all timesteps at once. ----
    logits = (jnp.dot(hs_ref[...], wout_ref[...],
                      preferred_element_type=jnp.float32)
              + bout_ref[...])                             # (seq_len, O)
    m = jnp.max(logits, axis=1, keepdims=True)
    lse = m + jnp.log(jnp.sum(jnp.exp(logits - m), axis=1, keepdims=True))
    out_ref[...] = logits - lse


def lstm_forward(x, params, h0, c0):
    """x: (seq_len, input_size). h0, c0: (1, hidden). Returns (log_probs, h, c)."""
    seq_len, _ = x.shape
    hidden = h0.shape[1]
    out_size = params["w_out_t"].shape[1]

    vmem_spec = pl.BlockSpec(memory_space=pltpu.MemorySpace.VMEM)

    out, hn, cn = pl.pallas_call(
        lstm_kernel,
        out_shape=(
            jax.ShapeDtypeStruct((seq_len, out_size), jnp.float32),
            jax.ShapeDtypeStruct((1, hidden), jnp.float32),
            jax.ShapeDtypeStruct((1, hidden), jnp.float32),
        ),
        in_specs=[vmem_spec] * 8,
        out_specs=(vmem_spec, vmem_spec, vmem_spec),
        scratch_shapes=[
            pltpu.VMEM((seq_len, 4 * hidden), jnp.float32),  # gates_x
            pltpu.VMEM((seq_len, hidden), jnp.float32),      # h_t history
        ],
    )(x, params["w_ih_t"], params["w_hh_t"], params["b_gates"],
      params["w_out_t"], params["b_out"], h0, c0)

    # PyTorch returns h, c with shape (num_layers=1, batch=1, hidden)
    return out, hn.reshape(1, 1, hidden), cn.reshape(1, 1, hidden)


# ----------------------------------------------------------------------------
# Parameter construction (PyTorch layout) and repacking for the kernel.
# ----------------------------------------------------------------------------
def init_raw_params(key, input_size, hidden_size, output_size):
    """Raw weights in PyTorch nn.LSTM layout: gate rows ordered [i, f, g, o]."""
    k = 1.0 / jnp.sqrt(jnp.float32(hidden_size))
    keys = jax.random.split(key, 6)
    w_ih = jax.random.uniform(keys[0], (4 * hidden_size, input_size), jnp.float32, -k, k)
    w_hh = jax.random.uniform(keys[1], (4 * hidden_size, hidden_size), jnp.float32, -k, k)
    b_ih = jax.random.uniform(keys[2], (4 * hidden_size,), jnp.float32, -k, k)
    b_hh = jax.random.uniform(keys[3], (4 * hidden_size,), jnp.float32, -k, k)
    w_out = jax.random.uniform(keys[4], (output_size, hidden_size), jnp.float32, -k, k)
    b_out = jax.random.uniform(keys[5], (output_size,), jnp.float32, -k, k)
    return {"w_ih": w_ih, "w_hh": w_hh, "b_ih": b_ih, "b_hh": b_hh,
            "w_out": w_out, "b_out": b_out}


def _reorder_ifgo_to_ifog(a, H):
    """Reorder leading gate axis from PyTorch [i,f,g,o] to kernel [i,f,o,g]."""
    i, f, g, o = a[0 * H:1 * H], a[1 * H:2 * H], a[2 * H:3 * H], a[3 * H:4 * H]
    return jnp.concatenate([i, f, o, g], axis=0)


def pack_kernel_params(raw, hidden_size):
    H = hidden_size
    w_ih = _reorder_ifgo_to_ifog(raw["w_ih"], H)           # (4H, I), order [i,f,o,g]
    w_hh = _reorder_ifgo_to_ifog(raw["w_hh"], H)           # (4H, H)
    b = _reorder_ifgo_to_ifog(raw["b_ih"] + raw["b_hh"], H)  # (4H,)
    return {
        "w_ih_t": w_ih.T,                                  # (I, 4H)
        "w_hh_t": w_hh.T,                                  # (H, 4H)
        "b_gates": b.reshape(1, -1),                       # (1, 4H)
        "w_out_t": raw["w_out"].T,                         # (H, O)
        "b_out": raw["b_out"].reshape(1, -1),              # (1, O)
    }


def lstm_reference(x, raw, h0, c0):
    """Pure-JAX reference with PyTorch gate order, for correctness checking."""
    H = h0.shape[1]
    w_ih_t, w_hh_t = raw["w_ih"].T, raw["w_hh"].T
    b = (raw["b_ih"] + raw["b_hh"]).reshape(1, -1)
    h, c = h0, c0
    hs = []
    for t in range(x.shape[0]):
        gates = x[t:t + 1] @ w_ih_t + h @ w_hh_t + b
        i_g = jax.nn.sigmoid(gates[:, 0 * H:1 * H])
        f_g = jax.nn.sigmoid(gates[:, 1 * H:2 * H])
        g_g = jnp.tanh(gates[:, 2 * H:3 * H])
        o_g = jax.nn.sigmoid(gates[:, 3 * H:4 * H])
        c = f_g * c + i_g * g_g
        h = o_g * jnp.tanh(c)
        hs.append(h)
    hs = jnp.concatenate(hs, axis=0)
    logits = hs @ raw["w_out"].T + raw["b_out"].reshape(1, -1)
    out = jax.nn.log_softmax(logits, axis=1)
    return out, h.reshape(1, 1, H), c.reshape(1, 1, H)


if __name__ == "__main__":
    # Mirrors the PyTorch script: n_letters = len(ascii_letters + " .,;'") = 57,
    # n_hidden = 128; small output_size (number of categories), batch = 1.
    n_letters = 57
    n_hidden = 128
    n_categories = 18
    seq_len = 8

    key = jax.random.PRNGKey(0)
    pkey, xkey = jax.random.split(key)
    raw = init_raw_params(pkey, n_letters, n_hidden, n_categories)
    params = pack_kernel_params(raw, n_hidden)

    # One-hot "letter" sequence, like letterToTensor applied per character.
    # TODO(synk): for one-hot inputs the input projection could be a row gather
    # via scalar prefetch; kept as a matmul so the kernel stays general.
    idx = jax.random.randint(xkey, (seq_len,), 0, n_letters)
    x = jax.nn.one_hot(idx, n_letters, dtype=jnp.float32)   # (seq_len, n_letters)

    h0 = jnp.zeros((1, n_hidden), jnp.float32)
    c0 = jnp.zeros((1, n_hidden), jnp.float32)

    log_probs, h, c = lstm_forward(x, params, h0, c0)
    jax.block_until_ready((log_probs, h, c))

    assert log_probs.shape == (seq_len, n_categories)
    assert h.shape == (1, 1, n_hidden) and c.shape == (1, 1, n_hidden)

    # Correctness check against a pure-JAX reference in PyTorch gate order.
    ref_out, ref_h, ref_c = lstm_reference(x, raw, h0, c0)
    assert jnp.allclose(log_probs, ref_out, atol=1e-3, rtol=1e-3)
    assert jnp.allclose(h, ref_h, atol=1e-3, rtol=1e-3)
    assert jnp.allclose(c, ref_c, atol=1e-3, rtol=1e-3)

    print("KERNEL_OK")
</pallas_src>

<mosaic_0001>
module attributes {stable_mosaic.version = 11 : i64} {
  func.func @lstm_kernel(%arg0: memref<8x57xf32, #tpu.memory_space<vmem>>, %arg1: memref<57x512xf32, #tpu.memory_space<vmem>>, %arg2: memref<128x512xf32, #tpu.memory_space<vmem>>, %arg3: memref<1x512xf32, #tpu.memory_space<vmem>>, %arg4: memref<128x18xf32, #tpu.memory_space<vmem>>, %arg5: memref<1x18xf32, #tpu.memory_space<vmem>>, %arg6: memref<1x128xf32, #tpu.memory_space<vmem>>, %arg7: memref<1x128xf32, #tpu.memory_space<vmem>>, %arg8: memref<8x18xf32, #tpu.memory_space<vmem>>, %arg9: memref<1x128xf32, #tpu.memory_space<vmem>>, %arg10: memref<1x128xf32, #tpu.memory_space<vmem>>, %arg11: memref<8x512xf32, #tpu.memory_space<vmem>>, %arg12: memref<8x128xf32, #tpu.memory_space<vmem>>) attributes {dimension_semantics = [], scalar_prefetch = 0 : i64, scratch_operands = 2 : i64, tpu.core_type = #tpu.core_type<tc>} {
    %c0 = arith.constant 0 : index
    %c0_0 = arith.constant 0 : index
    %0 = vector.load %arg0[%c0, %c0_0] : memref<8x57xf32, #tpu.memory_space<vmem>>, vector<8x57xf32>
    %c0_1 = arith.constant 0 : index
    %c0_2 = arith.constant 0 : index
    %1 = vector.load %arg1[%c0_1, %c0_2] : memref<57x512xf32, #tpu.memory_space<vmem>>, vector<57x512xf32>
    %cst = arith.constant dense<0.000000e+00> : vector<8x512xf32>
    %2 = tpu.matmul %0, %1, %cst {dimension_numbers = #tpu.dot_dimension_numbers<[1], [0], [0], [1], [0, 0, 1, 1], [], []>} : vector<8x57xf32>, vector<57x512xf32>, vector<8x512xf32> -> vector<8x512xf32>
    %c0_3 = arith.constant 0 : index
    %c0_4 = arith.constant 0 : index
    %3 = vector.load %arg3[%c0_3, %c0_4] : memref<1x512xf32, #tpu.memory_space<vmem>>, vector<1x512xf32>
    %4 = vector.broadcast %3 : vector<1x512xf32> to vector<8x512xf32>
    %5 = arith.addf %2, %4 : vector<8x512xf32>
    %c0_5 = arith.constant 0 : index
    %c0_6 = arith.constant 0 : index
    %6 = vector.load %arg11[%c0_5, %c0_6] : memref<8x512xf32, #tpu.memory_space<vmem>>, vector<8x512xf32>
    tpu.vector_store %arg11[%c0_5, %c0_6], %5 {strides = array<i32>} : memref<8x512xf32, #tpu.memory_space<vmem>>, vector<8x512xf32>,
    %c0_7 = arith.constant 0 : index
    %c0_8 = arith.constant 0 : index
    %7 = vector.load %arg6[%c0_7, %c0_8] : memref<1x128xf32, #tpu.memory_space<vmem>>, vector<1x128xf32>
    %c0_9 = arith.constant 0 : index
    %c0_10 = arith.constant 0 : index
    %8 = vector.load %arg7[%c0_9, %c0_10] : memref<1x128xf32, #tpu.memory_space<vmem>>, vector<1x128xf32>
    %c0_i32 = arith.constant 0 : i32
    %9 = arith.index_cast %c0_i32 : i32 to index
    %c0_11 = arith.constant 0 : index
    %10 = vector.load %arg11[%9, %c0_11] : memref<8x512xf32, #tpu.memory_space<vmem>>, vector<1x512xf32>
    %c0_12 = arith.constant 0 : index
    %c0_13 = arith.constant 0 : index
    %11 = vector.load %arg2[%c0_12, %c0_13] : memref<128x512xf32, #tpu.memory_space<vmem>>, vector<128x512xf32>
    %cst_14 = arith.constant dense<0.000000e+00> : vector<1x512xf32>
    %12 = tpu.matmul %7, %11, %cst_14 {dimension_numbers = #tpu.dot_dimension_numbers<[1], [0], [0], [1], [0, 0, 1, 1], [], []>} : vector<1x128xf32>, vector<128x512xf32>, vector<1x512xf32> -> vector<1x512xf32>
    %13 = arith.addf %10, %12 : vector<1x512xf32>
    %14 = vector.extract_strided_slice %13 {offsets = [0, 0], sizes = [1, 384], strides = [1, 1]} : vector<1x512xf32> to vector<1x384xf32>
    %cst_15 = arith.constant 5.000000e-01 : f32
    %15 = vector.broadcast %cst_15 : f32 to vector<1x384xf32>
    %16 = arith.mulf %15, %14 : vector<1x384xf32>
    %17 = math.tanh %16 : vector<1x384xf32>
    %cst_16 = arith.constant 1.000000e+00 : f32
    %18 = vector.broadcast %cst_16 : f32 to vector<1x384xf32>
    %19 = arith.addf %17, %18 : vector<1x384xf32>
    %cst_17 = arith.constant 5.000000e-01 : f32
    %20 = vector.broadcast %cst_17 : f32 to vector<1x384xf32>
    %21 = arith.mulf %20, %19 : vector<1x384xf32>
    %22 = vector.extract_strided_slice %21 {offsets = [0, 0], sizes = [1, 128], strides = [1, 1]} : vector<1x384xf32> to vector<1x128xf32>
    %23 = vector.extract_strided_slice %21 {offsets = [0, 128], sizes = [1, 128], strides = [1, 1]} : vector<1x384xf32> to vector<1x128xf32>
    %24 = vector.extract_strided_slice %21 {offsets = [0, 256], sizes = [1, 128], strides = [1, 1]} : vector<1x384xf32> to vector<1x128xf32>
    %25 = vector.extract_strided_slice %13 {offsets = [0, 384], sizes = [1, 128], strides = [1, 1]} : vector<1x512xf32> to vector<1x128xf32>
    %26 = math.tanh %25 : vector<1x128xf32>
    %27 = arith.mulf %23, %8 : vector<1x128xf32>
    %28 = arith.mulf %22, %26 : vector<1x128xf32>
    %29 = arith.addf %27, %28 : vector<1x128xf32>
    %30 = math.tanh %29 : vector<1x128xf32>
    %31 = arith.mulf %24, %30 : vector<1x128xf32>
    %32 = arith.index_cast %c0_i32 : i32 to index
    %c0_18 = arith.constant 0 : index
    %33 = vector.load %arg12[%32, %c0_18] : memref<8x128xf32, #tpu.memory_space<vmem>>, vector<1x128xf32>
    tpu.vector_store %arg12[%32, %c0_18], %31 {strides = array<i32>} : memref<8x128xf32, #tpu.memory_space<vmem>>, vector<1x128xf32>,
    %c1_i32 = arith.constant 1 : i32
    %34 = arith.index_cast %c1_i32 : i32 to index
    %c0_19 = arith.constant 0 : index
    %35 = vector.load %arg11[%34, %c0_19] : memref<8x512xf32, #tpu.memory_space<vmem>>, vector<1x512xf32>
    %c0_20 = arith.constant 0 : index
    %c0_21 = arith.constant 0 : index
    %36 = vector.load %arg2[%c0_20, %c0_21] : memref<128x512xf32, #tpu.memory_space<vmem>>, vector<128x512xf32>
    %cst_22 = arith.constant dense<0.000000e+00> : vector<1x512xf32>
    %37 = tpu.matmul %31, %36, %cst_22 {dimension_numbers = #tpu.dot_dimension_numbers<[1], [0], [0], [1], [0, 0, 1, 1], [], []>} : vector<1x128xf32>, vector<128x512xf32>, vector<1x512xf32> -> vector<1x512xf32>
    %38 = arith.addf %35, %37 : vector<1x512xf32>
    %39 = vector.extract_strided_slice %38 {offsets = [0, 0], sizes = [1, 384], strides = [1, 1]} : vector<1x512xf32> to vector<1x384xf32>
    %cst_23 = arith.constant 5.000000e-01 : f32
    %40 = vector.broadcast %cst_23 : f32 to vector<1x384xf32>
    %41 = arith.mulf %40, %39 : vector<1x384xf32>
    %42 = math.tanh %41 : vector<1x384xf32>
    %cst_24 = arith.constant 1.000000e+00 : f32
    %43 = vector.broadcast %cst_24 : f32 to vector<1x384xf32>
    %44 = arith.addf %42, %43 : vector<1x384xf32>
    %cst_25 = arith.constant 5.000000e-01 : f32
    %45 = vector.broadcast %cst_25 : f32 to vector<1x384xf32>
    %46 = arith.mulf %45, %44 : vector<1x384xf32>
    %47 = vector.extract_strided_slice %46 {offsets = [0, 0], sizes = [1, 128], strides = [1, 1]} : vector<1x384xf32> to vector<1x128xf32>
    %48 = vector.extract_strided_slice %46 {offsets = [0, 128], sizes = [1, 128], strides = [1, 1]} : vector<1x384xf32> to vector<1x128xf32>
    %49 = vector.extract_strided_slice %46 {offsets = [0, 256], sizes = [1, 128], strides = [1, 1]} : vector<1x384xf32> to vector<1x128xf32>
    %50 = vector.extract_strided_slice %38 {offsets = [0, 384], sizes = [1, 128], strides = [1, 1]} : vector<1x512xf32> to vector<1x128xf32>
    %51 = math.tanh %50 : vector<1x128xf32>
    %52 = arith.mulf %48, %29 : vector<1x128xf32>
    %53 = arith.mulf %47, %51 : vector<1x128xf32>
    %54 = arith.addf %52, %53 : vector<1x128xf32>
    %55 = math.tanh %54 : vector<1x128xf32>
    %56 = arith.mulf %49, %55 : vector<1x128xf32>
    %57 = arith.index_cast %c1_i32 : i32 to index
    %c0_26 = arith.constant 0 : index
    %58 = vector.load %arg12[%57, %c0_26] : memref<8x128xf32, #tpu.memory_space<vmem>>, vector<1x128xf32>
    tpu.vector_store %arg12[%57, %c0_26], %56 {strides = array<i32>} : memref<8x128xf32, #tpu.memory_space<vmem>>, vector<1x128xf32>,
    %c2_i32 = arith.constant 2 : i32
    %59 = arith.index_cast %c2_i32 : i32 to index
    %c0_27 = arith.constant 0 : index
    %60 = vector.load %arg11[%59, %c0_27] : memref<8x512xf32, #tpu.memory_space<vmem>>, vector<1x512xf32>
    %c0_28 = arith.constant 0 : index
    %c0_29 = arith.constant 0 : index
    %61 = vector.load %arg2[%c0_28, %c0_29] : memref<128x512xf32, #tpu.memory_space<vmem>>, vector<128x512xf32>
    %cst_30 = arith.constant dense<0.000000e+00> : vector<1x512xf32>
    %62 = tpu.matmul %56, %61, %cst_30 {dimension_numbers = #tpu.dot_dimension_numbers<[1], [0], [0], [1], [0, 0, 1, 1], [], []>} : vector<1x128xf32>, vector<128x512xf32>, vector<1x512xf32> -> vector<1x512xf32>
    %63 = arith.addf %60, %62 : vector<1x512xf32>
    %64 = vector.extract_strided_slice %63 {offsets = [0, 0], sizes = [1, 384], strides = [1, 1]} : vector<1x512xf32> to vector<1x384xf32>
    %cst_31 = arith.constant 5.000000e-01 : f32
    %65 = vector.broadcast %cst_31 : f32 to vector<1x384xf32>
    %66 = arith.mulf %65, %64 : vector<1x384xf32>
    %67 = math.tanh %66 : vector<1x384xf32>
    %cst_32 = arith.constant 1.000000e+00 : f32
    %68 = vector.broadcast %cst_32 : f32 to vector<1x384xf32>
    %69 = arith.addf %67, %68 : vector<1x384xf32>
    %cst_33 = arith.constant 5.000000e-01 : f32
    %70 = vector.broadcast %cst_33 : f32 to vector<1x384xf32>
    %71 = arith.mulf %70, %69 : vector<1x384xf32>
    %72 = vector.extract_strided_slice %71 {offsets = [0, 0], sizes = [1, 128], strides = [1, 1]} : vector<1x384xf32> to vector<1x128xf32>
    %73 = vector.extract_strided_slice %71 {offsets = [0, 128], sizes = [1, 128], strides = [1, 1]} : vector<1x384xf32> to vector<1x128xf32>
    %74 = vector.extract_strided_slice %71 {offsets = [0, 256], sizes = [1, 128], strides = [1, 1]} : vector<1x384xf32> to vector<1x128xf32>
    %75 = vector.extract_strided_slice %63 {offsets = [0, 384], sizes = [1, 128], strides = [1, 1]} : vector<1x512xf32> to vector<1x128xf32>
    %76 = math.tanh %75 : vector<1x128xf32>
    %77 = arith.mulf %73, %54 : vector<1x128xf32>
    %78 = arith.mulf %72, %76 : vector<1x128xf32>
    %79 = arith.addf %77, %78 : vector<1x128xf32>
    %80 = math.tanh %79 : vector<1x128xf32>
    %81 = arith.mulf %74, %80 : vector<1x128xf32>
    %82 = arith.index_cast %c2_i32 : i32 to index
    %c0_34 = arith.constant 0 : index
    %83 = vector.load %arg12[%82, %c0_34] : memref<8x128xf32, #tpu.memory_space<vmem>>, vector<1x128xf32>
    tpu.vector_store %arg12[%82, %c0_34], %81 {strides = array<i32>} : memref<8x128xf32, #tpu.memory_space<vmem>>, vector<1x128xf32>,
    %c3_i32 = arith.constant 3 : i32
    %84 = arith.index_cast %c3_i32 : i32 to index
    %c0_35 = arith.constant 0 : index
    %85 = vector.load %arg11[%84, %c0_35] : memref<8x512xf32, #tpu.memory_space<vmem>>, vector<1x512xf32>
    %c0_36 = arith.constant 0 : index
    %c0_37 = arith.constant 0 : index
    %86 = vector.load %arg2[%c0_36, %c0_37] : memref<128x512xf32, #tpu.memory_space<vmem>>, vector<128x512xf32>
    %cst_38 = arith.constant dense<0.000000e+00> : vector<1x512xf32>
    %87 = tpu.matmul %81, %86, %cst_38 {dimension_numbers = #tpu.dot_dimension_numbers<[1], [0], [0], [1], [0, 0, 1, 1], [], []>} : vector<1x128xf32>, vector<128x512xf32>, vector<1x512xf32> -> vector<1x512xf32>
    %88 = arith.addf %85, %87 : vector<1x512xf32>
    %89 = vector.extract_strided_slice %88 {offsets = [0, 0], sizes = [1, 384], strides = [1, 1]} : vector<1x512xf32> to vector<1x384xf32>
    %cst_39 = arith.constant 5.000000e-01 : f32
    %90 = vector.broadcast %cst_39 : f32 to vector<1x384xf32>
    %91 = arith.mulf %90, %89 : vector<1x384xf32>
    %92 = math.tanh %91 : vector<1x384xf32>
    %cst_40 = arith.constant 1.000000e+00 : f32
    %93 = vector.broadcast %cst_40 : f32 to vector<1x384xf32>
    %94 = arith.addf %92, %93 : vector<1x384xf32>
    %cst_41 = arith.constant 5.000000e-01 : f32
    %95 = vector.broadcast %cst_41 : f32 to vector<1x384xf32>
    %96 = arith.mulf %95, %94 : vector<1x384xf32>
    %97 = vector.extract_strided_slice %96 {offsets = [0, 0], sizes = [1, 128], strides = [1, 1]} : vector<1x384xf32> to vector<1x128xf32>
    %98 = vector.extract_strided_slice %96 {offsets = [0, 128], sizes = [1, 128], strides = [1, 1]} : vector<1x384xf32> to vector<1x128xf32>
    %99 = vector.extract_strided_slice %96 {offsets = [0, 256], sizes = [1, 128], strides = [1, 1]} : vector<1x384xf32> to vector<1x128xf32>
    %100 = vector.extract_strided_slice %88 {offsets = [0, 384], sizes = [1, 128], strides = [1, 1]} : vector<1x512xf32> to vector<1x128xf32>
    %101 = math.tanh %100 : vector<1x128xf32>
    %102 = arith.mulf %98, %79 : vector<1x128xf32>
    %103 = arith.mulf %97, %101 : vector<1x128xf32>
    %104 = arith.addf %102, %103 : vector<1x128xf32>
    %105 = math.tanh %104 : vector<1x128xf32>
    %106 = arith.mulf %99, %105 : vector<1x128xf32>
    %107 = arith.index_cast %c3_i32 : i32 to index
    %c0_42 = arith.constant 0 : index
    %108 = vector.load %arg12[%107, %c0_42] : memref<8x128xf32, #tpu.memory_space<vmem>>, vector<1x128xf32>
    tpu.vector_store %arg12[%107, %c0_42], %106 {strides = array<i32>} : memref<8x128xf32, #tpu.memory_space<vmem>>, vector<1x128xf32>,
    %c4_i32 = arith.constant 4 : i32
    %109 = arith.index_cast %c4_i32 : i32 to index
    %c0_43 = arith.constant 0 : index
    %110 = vector.load %arg11[%109, %c0_43] : memref<8x512xf32, #tpu.memory_space<vmem>>, vector<1x512xf32>
    %c0_44 = arith.constant 0 : index
    %c0_45 = arith.constant 0 : index
    %111 = vector.load %arg2[%c0_44, %c0_45] : memref<128x512xf32, #tpu.memory_space<vmem>>, vector<128x512xf32>
    %cst_46 = arith.constant dense<0.000000e+00> : vector<1x512xf32>
    %112 = tpu.matmul %106, %111, %cst_46 {dimension_numbers = #tpu.dot_dimension_numbers<[1], [0], [0], [1], [0, 0, 1, 1], [], []>} : vector<1x128xf32>, vector<128x512xf32>, vector<1x512xf32> -> vector<1x512xf32>
    %113 = arith.addf %110, %112 : vector<1x512xf32>
    %114 = vector.extract_strided_slice %113 {offsets = [0, 0], sizes = [1, 384], strides = [1, 1]} : vector<1x512xf32> to vector<1x384xf32>
    %cst_47 = arith.constant 5.000000e-01 : f32
    %115 = vector.broadcast %cst_47 : f32 to vector<1x384xf32>
    %116 = arith.mulf %115, %114 : vector<1x384xf32>
    %117 = math.tanh %116 : vector<1x384xf32>
    %cst_48 = arith.constant 1.000000e+00 : f32
    %118 = vector.broadcast %cst_48 : f32 to vector<1x384xf32>
    %119 = arith.addf %117, %118 : vector<1x384xf32>
    %cst_49 = arith.constant 5.000000e-01 : f32
    %120 = vector.broadcast %cst_49 : f32 to vector<1x384xf32>
    %121 = arith.mulf %120, %119 : vector<1x384xf32>
    %122 = vector.extract_strided_slice %121 {offsets = [0, 0], sizes = [1, 128], strides = [1, 1]} : vector<1x384xf32> to vector<1x128xf32>
    %123 = vector.extract_strided_slice %121 {offsets = [0, 128], sizes = [1, 128], strides = [1, 1]} : vector<1x384xf32> to vector<1x128xf32>
    %124 = vector.extract_strided_slice %121 {offsets = [0, 256], sizes = [1, 128], strides = [1, 1]} : vector<1x384xf32> to vector<1x128xf32>
    %125 = vector.extract_strided_slice %113 {offsets = [0, 384], sizes = [1, 128], strides = [1, 1]} : vector<1x512xf32> to vector<1x128xf32>
    %126 = math.tanh %125 : vector<1x128xf32>
    %127 = arith.mulf %123, %104 : vector<1x128xf32>
    %128 = arith.mulf %122, %126 : vector<1x128xf32>
    %129 = arith.addf %127, %128 : vector<1x128xf32>
    %130 = math.tanh %129 : vector<1x128xf32>
    %131 = arith.mulf %124, %130 : vector<1x128xf32>
    %132 = arith.index_cast %c4_i32 : i32 to index
    %c0_50 = arith.constant 0 : index
    %133 = vector.load %arg12[%132, %c0_50] : memref<8x128xf32, #tpu.memory_space<vmem>>, vector<1x128xf32>
    tpu.vector_store %arg12[%132, %c0_50], %131 {strides = array<i32>} : memref<8x128xf32, #tpu.memory_space<vmem>>, vector<1x128xf32>,
    %c5_i32 = arith.constant 5 : i32
    %134 = arith.index_cast %c5_i32 : i32 to index
    %c0_51 = arith.constant 0 : index
    %135 = vector.load %arg11[%134, %c0_51] : memref<8x512xf32, #tpu.memory_space<vmem>>, vector<1x512xf32>
    %c0_52 = arith.constant 0 : index
    %c0_53 = arith.constant 0 : index
    %136 = vector.load %arg2[%c0_52, %c0_53] : memref<128x512xf32, #tpu.memory_space<vmem>>, vector<128x512xf32>
    %cst_54 = arith.constant dense<0.000000e+00> : vector<1x512xf32>
    %137 = tpu.matmul %131, %136, %cst_54 {dimension_numbers = #tpu.dot_dimension_numbers<[1], [0], [0], [1], [0, 0, 1, 1], [], []>} : vector<1x128xf32>, vector<128x512xf32>, vector<1x512xf32> -> vector<1x512xf32>
    %138 = arith.addf %135, %137 : vector<1x512xf32>
    %139 = vector.extract_strided_slice %138 {offsets = [0, 0], sizes = [1, 384], strides = [1, 1]} : vector<1x512xf32> to vector<1x384xf32>
    %cst_55 = arith.constant 5.000000e-01 : f32
    %140 = vector.broadcast %cst_55 : f32 to vector<1x384xf32>
    %141 = arith.mulf %140, %139 : vector<1x384xf32>
    %142 = math.tanh %141 : vector<1x384xf32>
    %cst_56 = arith.constant 1.000000e+00 : f32
    %143 = vector.broadcast %cst_56 : f32 to vector<1x384xf32>
    %144 = arith.addf %142, %143 : vector<1x384xf32>
    %cst_57 = arith.constant 5.000000e-01 : f32
    %145 = vector.broadcast %cst_57 : f32 to vector<1x384xf32>
    %146 = arith.mulf %145, %144 : vector<1x384xf32>
    %147 = vector.extract_strided_slice %146 {offsets = [0, 0], sizes = [1, 128], strides = [1, 1]} : vector<1x384xf32> to vector<1x128xf32>
    %148 = vector.extract_strided_slice %146 {offsets = [0, 128], sizes = [1, 128], strides = [1, 1]} : vector<1x384xf32> to vector<1x128xf32>
    %149 = vector.extract_strided_slice %146 {offsets = [0, 256], sizes = [1, 128], strides = [1, 1]} : vector<1x384xf32> to vector<1x128xf32>
    %150 = vector.extract_strided_slice %138 {offsets = [0, 384], sizes = [1, 128], strides = [1, 1]} : vector<1x512xf32> to vector<1x128xf32>
    %151 = math.tanh %150 : vector<1x128xf32>
    %152 = arith.mulf %148, %129 : vector<1x128xf32>
    %153 = arith.mulf %147, %151 : vector<1x128xf32>
    %154 = arith.addf %152, %153 : vector<1x128xf32>
    %155 = math.tanh %154 : vector<1x128xf32>
    %156 = arith.mulf %149, %155 : vector<1x128xf32>
    %157 = arith.index_cast %c5_i32 : i32 to index
    %c0_58 = arith.constant 0 : index
    %158 = vector.load %arg12[%157, %c0_58] : memref<8x128xf32, #tpu.memory_space<vmem>>, vector<1x128xf32>
    tpu.vector_store %arg12[%157, %c0_58], %156 {strides = array<i32>} : memref<8x128xf32, #tpu.memory_space<vmem>>, vector<1x128xf32>,
    %c6_i32 = arith.constant 6 : i32
    %159 = arith.index_cast %c6_i32 : i32 to index
    %c0_59 = arith.constant 0 : index
    %160 = vector.load %arg11[%159, %c0_59] : memref<8x512xf32, #tpu.memory_space<vmem>>, vector<1x512xf32>
    %c0_60 = arith.constant 0 : index
    %c0_61 = arith.constant 0 : index
    %161 = vector.load %arg2[%c0_60, %c0_61] : memref<128x512xf32, #tpu.memory_space<vmem>>, vector<128x512xf32>
    %cst_62 = arith.constant dense<0.000000e+00> : vector<1x512xf32>
    %162 = tpu.matmul %156, %161, %cst_62 {dimension_numbers = #tpu.dot_dimension_numbers<[1], [0], [0], [1], [0, 0, 1, 1], [], []>} : vector<1x128xf32>, vector<128x512xf32>, vector<1x512xf32> -> vector<1x512xf32>
    %163 = arith.addf %160, %162 : vector<1x512xf32>
    %164 = vector.extract_strided_slice %163 {offsets = [0, 0], sizes = [1, 384], strides = [1, 1]} : vector<1x512xf32> to vector<1x384xf32>
    %cst_63 = arith.constant 5.000000e-01 : f32
    %165 = vector.broadcast %cst_63 : f32 to vector<1x384xf32>
    %166 = arith.mulf %165, %164 : vector<1x384xf32>
    %167 = math.tanh %166 : vector<1x384xf32>
    %cst_64 = arith.constant 1.000000e+00 : f32
    %168 = vector.broadcast %cst_64 : f32 to vector<1x384xf32>
    %169 = arith.addf %167, %168 : vector<1x384xf32>
    %cst_65 = arith.constant 5.000000e-01 : f32
    %170 = vector.broadcast %cst_65 : f32 to vector<1x384xf32>
    %171 = arith.mulf %170, %169 : vector<1x384xf32>
    %172 = vector.extract_strided_slice %171 {offsets = [0, 0], sizes = [1, 128], strides = [1, 1]} : vector<1x384xf32> to vector<1x128xf32>
    %173 = vector.extract_strided_slice %171 {offsets = [0, 128], sizes = [1, 128], strides = [1, 1]} : vector<1x384xf32> to vector<1x128xf32>
    %174 = vector.extract_strided_slice %171 {offsets = [0, 256], sizes = [1, 128], strides = [1, 1]} : vector<1x384xf32> to vector<1x128xf32>
    %175 = vector.extract_strided_slice %163 {offsets = [0, 384], sizes = [1, 128], strides = [1, 1]} : vector<1x512xf32> to vector<1x128xf32>
    %176 = math.tanh %175 : vector<1x128xf32>
    %177 = arith.mulf %173, %154 : vector<1x128xf32>
    %178 = arith.mulf %172, %176 : vector<1x128xf32>
    %179 = arith.addf %177, %178 : vector<1x128xf32>
    %180 = math.tanh %179 : vector<1x128xf32>
    %181 = arith.mulf %174, %180 : vector<1x128xf32>
    %182 = arith.index_cast %c6_i32 : i32 to index
    %c0_66 = arith.constant 0 : index
    %183 = vector.load %arg12[%182, %c0_66] : memref<8x128xf32, #tpu.memory_space<vmem>>, vector<1x128xf32>
    tpu.vector_store %arg12[%182, %c0_66], %181 {strides = array<i32>} : memref<8x128xf32, #tpu.memory_space<vmem>>, vector<1x128xf32>,
    %c7_i32 = arith.constant 7 : i32
    %184 = arith.index_cast %c7_i32 : i32 to index
    %c0_67 = arith.constant 0 : index
    %185 = vector.load %arg11[%184, %c0_67] : memref<8x512xf32, #tpu.memory_space<vmem>>, vector<1x512xf32>
    %c0_68 = arith.constant 0 : index
    %c0_69 = arith.constant 0 : index
    %186 = vector.load %arg2[%c0_68, %c0_69] : memref<128x512xf32, #tpu.memory_space<vmem>>, vector<128x512xf32>
    %cst_70 = arith.constant dense<0.000000e+00> : vector<1x512xf32>
    %187 = tpu.matmul %181, %186, %cst_70 {dimension_numbers = #tpu.dot_dimension_numbers<[1], [0], [0], [1], [0, 0, 1, 1], [], []>} : vector<1x128xf32>, vector<128x512xf32>, vector<1x512xf32> -> vector<1x512xf32>
    %188 = arith.addf %185, %187 : vector<1x512xf32>
    %189 = vector.extract_strided_slice %188 {offsets = [0, 0], sizes = [1, 384], strides = [1, 1]} : vector<1x512xf32> to vector<1x384xf32>
    %cst_71 = arith.constant 5.000000e-01 : f32
    %190 = vector.broadcast %cst_71 : f32 to vector<1x384xf32>
    %191 = arith.mulf %190, %189 : vector<1x384xf32>
    %192 = math.tanh %191 : vector<1x384xf32>
    %cst_72 = arith.constant 1.000000e+00 : f32
    %193 = vector.broadcast %cst_72 : f32 to vector<1x384xf32>
    %194 = arith.addf %192, %193 : vector<1x384xf32>
    %cst_73 = arith.constant 5.000000e-01 : f32
    %195 = vector.broadcast %cst_73 : f32 to vector<1x384xf32>
    %196 = arith.mulf %195, %194 : vector<1x384xf32>
    %197 = vector.extract_strided_slice %196 {offsets = [0, 0], sizes = [1, 128], strides = [1, 1]} : vector<1x384xf32> to vector<1x128xf32>
    %198 = vector.extract_strided_slice %196 {offsets = [0, 128], sizes = [1, 128], strides = [1, 1]} : vector<1x384xf32> to vector<1x128xf32>
    %199 = vector.extract_strided_slice %196 {offsets = [0, 256], sizes = [1, 128], strides = [1, 1]} : vector<1x384xf32> to vector<1x128xf32>
    %200 = vector.extract_strided_slice %188 {offsets = [0, 384], sizes = [1, 128], strides = [1, 1]} : vector<1x512xf32> to vector<1x128xf32>
    %201 = math.tanh %200 : vector<1x128xf32>
    %202 = arith.mulf %198, %179 : vector<1x128xf32>
    %203 = arith.mulf %197, %201 : vector<1x128xf32>
    %204 = arith.addf %202, %203 : vector<1x128xf32>
    %205 = math.tanh %204 : vector<1x128xf32>
    %206 = arith.mulf %199, %205 : vector<1x128xf32>
    %207 = arith.index_cast %c7_i32 : i32 to index
    %c0_74 = arith.constant 0 : index
    %208 = vector.load %arg12[%207, %c0_74] : memref<8x128xf32, #tpu.memory_space<vmem>>, vector<1x128xf32>
    tpu.vector_store %arg12[%207, %c0_74], %206 {strides = array<i32>} : memref<8x128xf32, #tpu.memory_space<vmem>>, vector<1x128xf32>,
    %c8_i32 = arith.constant 8 : i32
    %c0_75 = arith.constant 0 : index
    %c0_76 = arith.constant 0 : index
    %209 = vector.load %arg9[%c0_75, %c0_76] : memref<1x128xf32, #tpu.memory_space<vmem>>, vector<1x128xf32>
    tpu.vector_store %arg9[%c0_75, %c0_76], %206 {strides = array<i32>} : memref<1x128xf32, #tpu.memory_space<vmem>>, vector<1x128xf32>,
    %c0_77 = arith.constant 0 : index
    %c0_78 = arith.constant 0 : index
    %210 = vector.load %arg10[%c0_77, %c0_78] : memref<1x128xf32, #tpu.memory_space<vmem>>, vector<1x128xf32>
    tpu.vector_store %arg10[%c0_77, %c0_78], %204 {strides = array<i32>} : memref<1x128xf32, #tpu.memory_space<vmem>>, vector<1x128xf32>,
    %c0_79 = arith.constant 0 : index
    %c0_80 = arith.constant 0 : index
    %211 = vector.load %arg12[%c0_79, %c0_80] : memref<8x128xf32, #tpu.memory_space<vmem>>, vector<8x128xf32>
    %c0_81 = arith.constant 0 : index
    %c0_82 = arith.constant 0 : index
    %212 = vector.load %arg4[%c0_81, %c0_82] : memref<128x18xf32, #tpu.memory_space<vmem>>, vector<128x18xf32>
    %cst_83 = arith.constant dense<0.000000e+00> : vector<8x18xf32>
    %213 = tpu.matmul %211, %212, %cst_83 {dimension_numbers = #tpu.dot_dimension_numbers<[1], [0], [0], [1], [0, 0, 1, 1], [], []>} : vector<8x128xf32>, vector<128x18xf32>, vector<8x18xf32> -> vector<8x18xf32>
    %c0_84 = arith.constant 0 : index
    %c0_85 = arith.constant 0 : index
    %214 = vector.load %arg5[%c0_84, %c0_85] : memref<1x18xf32, #tpu.memory_space<vmem>>, vector<1x18xf32>
    %215 = vector.broadcast %214 : vector<1x18xf32> to vector<8x18xf32>
    %216 = arith.addf %213, %215 : vector<8x18xf32>
    %cst_86 = arith.constant dense<0xFF800000> : vector<8xf32>
    %217 = vector.multi_reduction <maximumf>, %216, %cst_86 [1] : vector<8x18xf32> to vector<8xf32>
    %218 = vector.shape_cast %217 : vector<8xf32> to vector<8x1xf32>
    %219 = vector.broadcast %218 : vector<8x1xf32> to vector<8x18xf32>
    %220 = arith.subf %216, %219 : vector<8x18xf32>
    %221 = math.exp %220 : vector<8x18xf32>
    %cst_87 = arith.constant dense<0.000000e+00> : vector<8xf32>
    %222 = vector.multi_reduction <add>, %221, %cst_87 [1] : vector<8x18xf32> to vector<8xf32>
    %223 = vector.shape_cast %222 : vector<8xf32> to vector<8x1xf32>
    %224 = math.log %223 : vector<8x1xf32>
    %225 = arith.addf %218, %224 : vector<8x1xf32>
    %226 = vector.broadcast %225 : vector<8x1xf32> to vector<8x18xf32>
    %227 = arith.subf %216, %226 : vector<8x18xf32>
    %c0_88 = arith.constant 0 : index
    %c0_89 = arith.constant 0 : index
    %228 = vector.load %arg8[%c0_88, %c0_89] : memref<8x18xf32, #tpu.memory_space<vmem>>, vector<8x18xf32>
    tpu.vector_store %arg8[%c0_88, %c0_89], %227 {strides = array<i32>} : memref<8x18xf32, #tpu.memory_space<vmem>>, vector<8x18xf32>,
    return
  }
}

</mosaic_0001>

<llo_original>
// kernel: tpu_custom_call.1
$region0: #{tpu_custom_call.1}
  #allocation0 [shape = 'u32[]', space=smem, size = 0x4, offset = 0x4, fixed_abs, tag = 'smem constant byte address 0x4 - core index']
  #allocation1 [shape = 'u32[144,128]{1,0:T(1,128)}', space=vmem, size = 0x12000, scoped, tag = 'internal scratch']
  #allocation2 [shape = 'f32[8,512]{1,0:T(8,128)}', space=vmem, size = 0x4000, scoped, tag = 'scratch operand']
  #allocation3 [shape = 'f32[8,128]{1,0:T(8,128)}', space=vmem, size = 0x1000, scoped, tag = 'scratch operand']
  %s0 = inlined_call_operand.vmem [shape: f32[8,57], index: 0, kind: input, shape index: {}]
  %s1 = inlined_call_operand.hbm [shape: f32[57,512], index: 1, kind: input, shape index: {}]
  %s2 = inlined_call_operand.hbm [shape: f32[128,512], index: 2, kind: input, shape index: {}]
  %s3 = inlined_call_operand.vmem [shape: f32[1,512], index: 3, kind: input, shape index: {}]
  %s4 = inlined_call_operand.vmem [shape: f32[128,18], index: 4, kind: input, shape index: {}]
  %s5 = inlined_call_operand.vmem [shape: f32[1,18], index: 5, kind: input, shape index: {}]
  %s6 = inlined_call_operand.vmem [shape: f32[1,128], index: 6, kind: input, shape index: {}]
  %s7 = inlined_call_operand.vmem [shape: f32[1,128], index: 7, kind: input, shape index: {}]
  %s8 = inlined_call_operand.hbm [shape: f32[8,18], index: 8, kind: output, shape index: {0}]
  %s9 = inlined_call_operand.hbm [shape: f32[1,128], index: 9, kind: output, shape index: {1}]
  %s10 = inlined_call_operand.hbm [shape: f32[1,128], index: 10, kind: output, shape index: {2}]
  %11 = xla_tuple %s8, %s9, %s10
  %s12 = sld [smem:[#allocation0]]
  $region66: #{tpu_custom_call.1} parent=0
    _
  %s14 = ssub.s32 1, %s12
  %s15 = scalar_select 0, %s14, %s12
  $region1: #{tpu_custom_call.1} parent=0
    #allocation4 [shape = 'u8[131072]{0}', space=vmem, size = 0x20000, scoped, tag = 'input window, operand 1, single buffered']
    #allocation5 [shape = 's32[1]{0}', space=sflag, size = 0x4, scoped, tag = 'scoped memory for tpu_custom_call.1']
    #allocation6 [shape = 's32[1]{0}', space=sflag, size = 0x4, scoped, tag = 'scoped memory for tpu_custom_call.1']
    #allocation7 [shape = 'u8[262144]{0}', space=vmem, size = 0x40000, scoped, tag = 'input window, operand 2, single buffered']
    #allocation8 [shape = 's32[1]{0}', space=sflag, size = 0x4, scoped, tag = 'scoped memory for tpu_custom_call.1']
    #allocation9 [shape = 'u8[4096]{0}', space=vmem, size = 0x1000, scoped, tag = 'output window, operand 0, single buffered']
    #allocation10 [shape = 'u8[512]{0}', space=vmem, size = 0x400, scoped, tag = 'output window, operand 1, single buffered']
    #allocation11 [shape = 's32[1]{0}', space=sflag, size = 0x4, scoped, tag = 'scoped memory for tpu_custom_call.1']
    #allocation12 [shape = 'u8[512]{0}', space=vmem, size = 0x400, scoped, tag = 'output window, operand 2, single buffered']
    %16 = vsyncpa [#allocation5], 0
    %17 = vsyncpa [#allocation8], 0
    %18 = vsyncpa [#allocation6], 0
    %19 = vsyncpa [#allocation11], 0
    // Predicated region
    $region2: #{tpu_custom_call.1} parent=1 // pred_check
      _
    $region3: #{tpu_custom_call.1} parent=1 // pred_check_branch
      %21 = sbr.rel (0) target = $region5
    $region4: #{tpu_custom_call.1} parent=1 // pred_region
      _
    $region5: #{tpu_custom_call.1} parent=1 // pred_fallthru
      _
    // Predicated region
    $region6: #{tpu_custom_call.1} parent=1 // pred_check
      _
    $region7: #{tpu_custom_call.1} parent=1 // pred_check_branch
      %23 = sbr.rel (0) target = $region9
    $region8: #{tpu_custom_call.1} parent=1 // pred_region
      %s25 = ssub.s32 4096, 4096
      %26 = vsyncadd [#allocation5], %s25
      %s27 = sshll.u32 [#allocation4], 4
      %s28 = int_to_ptr.vmem [resolvable:$true] %s27
      %33 = dma.hbm_to_vmem [thread:$0]  %s1, 4096, %s28, [#allocation5], 512, 512, 32
    $region9: #{tpu_custom_call.1} parent=1 // pred_fallthru
      _
    // Predicated region
    $region10: #{tpu_custom_call.1} parent=1 // pred_check
      _
    $region11: #{tpu_custom_call.1} parent=1 // pred_check_branch
      %35 = sbr.rel (0) target = $region13
    $region12: #{tpu_custom_call.1} parent=1 // pred_region
      %s37 = ssub.s32 8192, 8192
      %38 = vsyncadd [#allocation8], %s37
      %s39 = sshll.u32 [#allocation7], 4
      %s40 = int_to_ptr.vmem [resolvable:$true] %s39
      %45 = dma.hbm_to_vmem [thread:$0]  %s2, 8192, %s40, [#allocation8], 512, 512, 32
    $region13: #{tpu_custom_call.1} parent=1 // pred_fallthru
      _
    // Predicated region
    $region14: #{tpu_custom_call.1} parent=1 // pred_check
      _
    $region15: #{tpu_custom_call.1} parent=1 // pred_check_branch
      %47 = sbr.rel (0) target = $region17
    $region16: #{tpu_custom_call.1} parent=1 // pred_region
      _
    $region17: #{tpu_custom_call.1} parent=1 // pred_fallthru
      _
    // Predicated region
    $region18: #{tpu_custom_call.1} parent=1 // pred_check
      _
    $region19: #{tpu_custom_call.1} parent=1 // pred_check_branch
      %49 = sbr.rel (0) target = $region21
    $region20: #{tpu_custom_call.1} parent=1 // pred_region
      _
    $region21: #{tpu_custom_call.1} parent=1 // pred_fallthru
      _
    // Predicated region
    $region22: #{tpu_custom_call.1} parent=1 // pred_check
      _
    $region23: #{tpu_custom_call.1} parent=1 // pred_check_branch
      %51 = sbr.rel (0) target = $region25
    $region24: #{tpu_custom_call.1} parent=1 // pred_region
      _
    $region25: #{tpu_custom_call.1} parent=1 // pred_fallthru
      _
    // Predicated region
    $region26: #{tpu_custom_call.1} parent=1 // pred_check
      _
    $region27: #{tpu_custom_call.1} parent=1 // pred_check_branch
      %53 = sbr.rel (0) target = $region29
    $region28: #{tpu_custom_call.1} parent=1 // pred_region
      _
    $region29: #{tpu_custom_call.1} parent=1 // pred_fallthru
      _
    // Predicated region
    $region30: #{tpu_custom_call.1} parent=1 // pred_check
      _
    $region31: #{tpu_custom_call.1} parent=1 // pred_check_branch
      %55 = sbr.rel (0) target = $region33
    $region32: #{tpu_custom_call.1} parent=1 // pred_region
      _
    $region33: #{tpu_custom_call.1} parent=1 // pred_fallthru
      _
    // Predicated region
    $region34: #{tpu_custom_call.1} parent=1 // pred_check
      _
    $region35: #{tpu_custom_call.1} parent=1 // pred_check_branch
      %57 = sbr.rel (0) target = $region37
    $region36: #{tpu_custom_call.1} parent=1 // pred_region
      %58 = dma.done [#allocation5], 4096
    $region37: #{tpu_custom_call.1} parent=1 // pred_fallthru
      _
    // Predicated region
    $region38: #{tpu_custom_call.1} parent=1 // pred_check
      _
    $region39: #{tpu_custom_call.1} parent=1 // pred_check_branch
      %60 = sbr.rel (0) target = $region41
    $region40: #{tpu_custom_call.1} parent=1 // pred_region
      %61 = dma.done [#allocation8], 8192
    $region41: #{tpu_custom_call.1} parent=1 // pred_fallthru
      _
    %v62 = vld [vmem:[%s0] sm:$0xff]
    %v63 = vld [vmem:[#allocation4] sm:$0xff]
    %v64 = vld [vmem:[#allocation4 + $0x8] sm:$0xff]
    %v65 = vld [vmem:[#allocation4 + $0x10] sm:$0xff]
    %v66 = vld [vmem:[#allocation4 + $0x18] sm:$0xff]
    %v67 = vld [vmem:[#allocation4 + $0x20] sm:$0xff]
    %v68 = vld [vmem:[#allocation4 + $0x28] sm:$0xff]
    %v69 = vld [vmem:[#allocation4 + $0x30] sm:$0xff]
    %v70 = vld [vmem:[#allocation4 + $0x38] sm:$0xff]
    %v71 = vld [vmem:[#allocation4 + $0x40] sm:$0xff]
    %v72 = vld [vmem:[#allocation4 + $0x48] sm:$0xff]
    %v73 = vld [vmem:[#allocation4 + $0x50] sm:$0xff]
    %v74 = vld [vmem:[#allocation4 + $0x58] sm:$0xff]
    %v75 = vld [vmem:[#allocation4 + $0x60] sm:$0xff]
    %v76 = vld [vmem:[#allocation4 + $0x68] sm:$0xff]
    %v77 = vld [vmem:[#allocation4 + $0x70] sm:$0xff]
    %v78 = vld [vmem:[#allocation4 + $0x78] sm:$0xff]
    %v79 = vld [vmem:[#allocation4 + $0x80] sm:$0xff]
    %v80 = vld [vmem:[#allocation4 + $0x88] sm:$0xff]
    %v81 = vld [vmem:[#allocation4 + $0x90] sm:$0xff]
    %v82 = vld [vmem:[#allocation4 + $0x98] sm:$0xff]
    %v83 = vld [vmem:[#allocation4 + $0xa0] sm:$0xff]
    %v84 = vld [vmem:[#allocation4 + $0xa8] sm:$0xff]
    %v85 = vld [vmem:[#allocation4 + $0xb0] sm:$0xff]
    %v86 = vld [vmem:[#allocation4 + $0xb8] sm:$0xff]
    %v87 = vld [vmem:[#allocation4 + $0xc0] sm:$0xff]
    %v88 = vld [vmem:[#allocation4 + $0xc8] sm:$0xff]
    %v89 = vld [vmem:[#allocation4 + $0xd0] sm:$0xff]
    %v90 = vld [vmem:[#allocation4 + $0xd8] sm:$0xff]
    %v91 = vld [vmem:[#allocation4 + $0xe0] sm:$0x1]
    %v92 = vld [vmem:[#allocation4 + $0xe8] sm:$0x1]
    %v93 = vld [vmem:[#allocation4 + $0xf0] sm:$0x1]
    %v94 = vld [vmem:[#allocation4 + $0xf8] sm:$0x1]
    %v95 = vld [vmem:[%s3] sm:$0xf]
    %v97 = vlaneseq
    %v98 = vshrl.u32 %v97, 7
    %v99 = vsub.s32 0, %v98
    %v100 = vrot.slane %v95, %v99
    %v101 = vlaneseq
    %v102 = vshrl.u32 %v101, 7
    %v103 = vsub.s32 1, %v102
    %v104 = vrot.slane %v95, %v103
    %v105 = vlaneseq
    %v106 = vshrl.u32 %v105, 7
    %v107 = vsub.s32 2, %v106
    %v108 = vrot.slane %v95, %v107
    %v109 = vlaneseq
    %v110 = vshrl.u32 %v109, 7
    %v111 = vsub.s32 3, %v110
    %v112 = vrot.slane %v95, %v111
    %vm117 = vcmask 465920
    %v119 = vsel %vm117, %v62, 0
    %vm121 = vcmask 1040384
    %v123 = vsel %vm121, %v91, 0
    %v126 = vsel %vm121, %v92, 0
    %v129 = vsel %vm121, %v93, 0
    %v132 = vsel %vm121, %v94, 0
    %134 = vmatprep.subr.mxu0 %v64
    %135 = vmatpush1.msra.mxu0 %v63
    %136 = vmatprep.subr.mxu0 %v68
    %137 = vmatpush1.msra.mxu0 %v67
    %138 = vmatprep.subr.mxu0 %v72
    %139 = vmatpush1.msra.mxu0 %v71
    %140 = vmatprep.subr.mxu0 %v76
    %141 = vmatpush1.msra.mxu0 %v75
    %142 = vmatprep.subr.mxu0 %v80
    %143 = vmatpush1.msra.mxu0 %v79
    %144 = vmatprep.subr.mxu0 %v84
    %145 = vmatpush1.msra.mxu0 %v83
    %146 = vmatprep.subr.mxu0 %v88
    %147 = vmatpush1.msra.mxu0 %v87
    %148 = vmatprep.subr.mxu0 %v126
    %149 = vmatpush1.msra.mxu0 %v123
    %150 = vmatprep.subr.mxu0 0.0
    %151 = vmatpush1.msra.mxu0 0.0
    %152 = vmatprep.subr.mxu0 0.0
    %153 = vmatpush1.msra.mxu0 0.0
    %154 = vmatprep.subr.mxu0 0.0
    %155 = vmatpush1.msra.mxu0 0.0
    %156 = vmatprep.subr.mxu0 0.0
    %157 = vmatpush1.msra.mxu0 0.0
    %158 = vmatprep.subr.mxu0 0.0
    %159 = vmatpush1.msra.mxu0 0.0
    %160 = vmatprep.subr.mxu0 0.0
    %161 = vmatpush1.msra.mxu0 0.0
    %162 = vmatprep.subr.mxu0 0.0
    %163 = vmatpush1.msra.mxu0 0.0
    %164 = vmatprep.subr.mxu0 0.0
    %165 = vmatpush1.msra.mxu0 0.0
    %166 = vmatprep.subr.mxu0 0.0
    %167 = vmatpush1.msra.mxu0 0.0
    %168 = vmatprep.subr.mxu0 0.0
    %169 = vmatpush1.msra.mxu0 0.0
    %170 = vmatprep.subr.mxu0 0.0
    %171 = vmatpush1.msra.mxu0 0.0
    %172 = vmatprep.subr.mxu0 0.0
    %173 = vmatpush1.msra.mxu0 0.0
    %174 = vmatprep.subr.mxu0 0.0
    %175 = vmatpush1.msra.mxu0 0.0
    %176 = vmatprep.subr.mxu0 0.0
    %177 = vmatpush1.msra.mxu0 0.0
    %178 = vmatprep.subr.mxu0 0.0
    %179 = vmatpush1.msra.mxu0 0.0
    %180 = vmatprep.subr.mxu0 0.0
    %181 = vmatpush1.msra.mxu0 0.0
    %182 = vmatprep.subr.mxu0 0.0
    %183 = vmatpush1.msra.mxu0 0.0
    %184 = vmatprep.subr.mxu0 0.0
    %185 = vmatpush1.msra.mxu0 0.0
    %186 = vmatprep.subr.mxu0 0.0
    %187 = vmatpush1.msra.mxu0 0.0
    %188 = vmatprep.subr.mxu0 0.0
    %189 = vmatpush1.msra.mxu0 0.0
    %190 = vmatprep.subr.mxu0 0.0
    %191 = vmatpush1.msra.mxu0 0.0
    %192 = vmatprep.subr.mxu0 0.0
    %193 = vmatpush1.msra.mxu0 0.0
    %194 = vmatprep.subr.mxu0 0.0
    %195 = vmatpush1.msra.mxu0 0.0
    %196 = vmatprep.subr.mxu0 0.0
    %197 = vmatpush1.msra.mxu0 0.0
    %198 = vmatprep.mubr.f32.mxu0 0.0
    %199 = vmatmul.mubr.f32.gmra.mrb[0].mxu0 %v119
    %v200 = vpop.f32.mrb[0].mxu0
    %v201 = vadd.f32 %v100, %v200
    %v202 = vpop.f32.mrb[0].mxu0
    %v203 = vadd.f32 %v104, %v202
    %204 = vdwg.mxu0
    %205 = vmatprep.subr.mxu0 %v66
    %206 = vmatpush1.msra.mxu0 %v65
    %207 = vmatprep.subr.mxu0 %v70
    %208 = vmatpush1.msra.mxu0 %v69
    %209 = vmatprep.subr.mxu0 %v74
    %210 = vmatpush1.msra.mxu0 %v73
    %211 = vmatprep.subr.mxu0 %v78
    %212 = vmatpush1.msra.mxu0 %v77
    %213 = vmatprep.subr.mxu0 %v82
    %214 = vmatpush1.msra.mxu0 %v81
    %215 = vmatprep.subr.mxu0 %v86
    %216 = vmatpush1.msra.mxu0 %v85
    %217 = vmatprep.subr.mxu0 %v90
    %218 = vmatpush1.msra.mxu0 %v89
    %219 = vmatprep.subr.mxu0 %v132
    %220 = vmatpush1.msra.mxu0 %v129
    %221 = vmatprep.subr.mxu0 0.0
    %222 = vmatpush1.msra.mxu0 0.0
    %223 = vmatprep.subr.mxu0 0.0
    %224 = vmatpush1.msra.mxu0 0.0
    %225 = vmatprep.subr.mxu0 0.0
    %226 = vmatpush1.msra.mxu0 0.0
    %227 = vmatprep.subr.mxu0 0.0
    %228 = vmatpush1.msra.mxu0 0.0
    %229 = vmatprep.subr.mxu0 0.0
    %230 = vmatpush1.msra.mxu0 0.0
    %231 = vmatprep.subr.mxu0 0.0
    %232 = vmatpush1.msra.mxu0 0.0
    %233 = vmatprep.subr.mxu0 0.0
    %234 = vmatpush1.msra.mxu0 0.0
    %235 = vmatprep.subr.mxu0 0.0
    %236 = vmatpush1.msra.mxu0 0.0
    %237 = vmatprep.subr.mxu0 0.0
    %238 = vmatpush1.msra.mxu0 0.0
    %239 = vmatprep.subr.mxu0 0.0
    %240 = vmatpush1.msra.mxu0 0.0
    %241 = vmatprep.subr.mxu0 0.0
    %242 = vmatpush1.msra.mxu0 0.0
    %243 = vmatprep.subr.mxu0 0.0
    %244 = vmatpush1.msra.mxu0 0.0
    %245 = vmatprep.subr.mxu0 0.0
    %246 = vmatpush1.msra.mxu0 0.0
    %247 = vmatprep.subr.mxu0 0.0
    %248 = vmatpush1.msra.mxu0 0.0
    %249 = vmatprep.subr.mxu0 0.0
    %250 = vmatpush1.msra.mxu0 0.0
    %251 = vmatprep.subr.mxu0 0.0
    %252 = vmatpush1.msra.mxu0 0.0
    %253 = vmatprep.subr.mxu0 0.0
    %254 = vmatpush1.msra.mxu0 0.0
    %255 = vmatprep.subr.mxu0 0.0
    %256 = vmatpush1.msra.mxu0 0.0
    %257 = vmatprep.subr.mxu0 0.0
    %258 = vmatpush1.msra.mxu0 0.0
    %259 = vmatprep.subr.mxu0 0.0
    %260 = vmatpush1.msra.mxu0 0.0
    %261 = vmatprep.subr.mxu0 0.0
    %262 = vmatpush1.msra.mxu0 0.0
    %263 = vmatprep.subr.mxu0 0.0
    %264 = vmatpush1.msra.mxu0 0.0
    %265 = vmatprep.subr.mxu0 0.0
    %266 = vmatpush1.msra.mxu0 0.0
    %267 = vmatprep.subr.mxu0 0.0
    %268 = vmatpush1.msra.mxu0 0.0
    %269 = vmatprep.mubr.f32.mxu0 0.0
    %270 = vmatmul.mubr.f32.gmra.mrb[0].mxu0 %v119
    %v271 = vpop.f32.mrb[0].mxu0
    %v272 = vadd.f32 %v108, %v271
    %v273 = vpop.f32.mrb[0].mxu0
    %v274 = vadd.f32 %v112, %v273
    %275 = vdwg.mxu0
    %276 = vst [vmem:[#allocation2] sm:$0xff] %v201
    %277 = vst [vmem:[#allocation2 + $0x8] sm:$0xff] %v203
    %278 = vst [vmem:[#allocation2 + $0x10] sm:$0xff] %v272
    %279 = vst [vmem:[#allocation2 + $0x18] sm:$0xff] %v274
    %v280 = vld [vmem:[%s6] sm:$0x1]
    %v281 = vld [vmem:[%s7] sm:$0x1]
    %v282 = vld [vmem:[#allocation2] ss:$8 sm:$0xf]
    %v283 = vld [vmem:[#allocation7] sm:$0xff]
    %v284 = vld [vmem:[#allocation7 + $0x8] sm:$0xff]
    %v285 = vld [vmem:[#allocation7 + $0x10] sm:$0xff]
    %v286 = vld [vmem:[#allocation7 + $0x18] sm:$0xff]
    %v287 = vld [vmem:[#allocation7 + $0x20] sm:$0xff]
    %v288 = vld [vmem:[#allocation7 + $0x28] sm:$0xff]
    %v289 = vld [vmem:[#allocation7 + $0x30] sm:$0xff]
    %v290 = vld [vmem:[#allocation7 + $0x38] sm:$0xff]
    %v291 = vld [vmem:[#allocation7 + $0x40] sm:$0xff]
    %v292 = vld [vmem:[#allocation7 + $0x48] sm:$0xff]
    %v293 = vld [vmem:[#allocation7 + $0x50] sm:$0xff]
    %v294 = vld [vmem:[#allocation7 + $0x58] sm:$0xff]
    %v295 = vld [vmem:[#allocation7 + $0x60] sm:$0xff]
    %v296 = vld [vmem:[#allocation7 + $0x68] sm:$0xff]
    %v297 = vld [vmem:[#allocation7 + $0x70] sm:$0xff]
    %v298 = vld [vmem:[#allocation7 + $0x78] sm:$0xff]
    %v299 = vld [vmem:[#allocation7 + $0x80] sm:$0xff]
    %v300 = vld [vmem:[#allocation7 + $0x88] sm:$0xff]
    %v301 = vld [vmem:[#allocation7 + $0x90] sm:$0xff]
    %v302 = vld [vmem:[#allocation7 + $0x98] sm:$0xff]
    %v303 = vld [vmem:[#allocation7 + $0xa0] sm:$0xff]
    %v304 = vld [vmem:[#allocation7 + $0xa8] sm:$0xff]
    %v305 = vld [vmem:[#allocation7 + $0xb0] sm:$0xff]
    %v306 = vld [vmem:[#allocation7 + $0xb8] sm:$0xff]
    %v307 = vld [vmem:[#allocation7 + $0xc0] sm:$0xff]
    %v308 = vld [vmem:[#allocation7 + $0xc8] sm:$0xff]
    %v309 = vld [vmem:[#allocation7 + $0xd0] sm:$0xff]
    %v310 = vld [vmem:[#allocation7 + $0xd8] sm:$0xff]
    %v311 = vld [vmem:[#allocation7 + $0xe0] sm:$0xff]
    %v312 = vld [vmem:[#allocation7 + $0xe8] sm:$0xff]
    %v313 = vld [vmem:[#allocation7 + $0xf0] sm:$0xff]
    %v314 = vld [vmem:[#allocation7 + $0xf8] sm:$0xff]
    %v315 = vld [vmem:[#allocation7 + $0x100] sm:$0xff]
    %v316 = vld [vmem:[#allocation7 + $0x108] sm:$0xff]
    %v317 = vld [vmem:[#allocation7 + $0x110] sm:$0xff]
    %v318 = vld [vmem:[#allocation7 + $0x118] sm:$0xff]
    %v319 = vld [vmem:[#allocation7 + $0x120] sm:$0xff]
    %v320 = vld [vmem:[#allocation7 + $0x128] sm:$0xff]
    %v321 = vld [vmem:[#allocation7 + $0x130] sm:$0xff]
    %v322 = vld [vmem:[#allocation7 + $0x138] sm:$0xff]
    %v323 = vld [vmem:[#allocation7 + $0x140] sm:$0xff]
    %v324 = vld [vmem:[#allocation7 + $0x148] sm:$0xff]
    %v325 = vld [vmem:[#allocation7 + $0x150] sm:$0xff]
    %v326 = vld [vmem:[#allocation7 + $0x158] sm:$0xff]
    %v327 = vld [vmem:[#allocation7 + $0x160] sm:$0xff]
    %v328 = vld [vmem:[#allocation7 + $0x168] sm:$0xff]
    %v329 = vld [vmem:[#allocation7 + $0x170] sm:$0xff]
    %v330 = vld [vmem:[#allocation7 + $0x178] sm:$0xff]
    %v331 = vld [vmem:[#allocation7 + $0x180] sm:$0xff]
    %v332 = vld [vmem:[#allocation7 + $0x188] sm:$0xff]
    %v333 = vld [vmem:[#allocation7 + $0x190] sm:$0xff]
    %v334 = vld [vmem:[#allocation7 + $0x198] sm:$0xff]
    %v335 = vld [vmem:[#allocation7 + $0x1a0] sm:$0xff]
    %v336 = vld [vmem:[#allocation7 + $0x1a8] sm:$0xff]
    %v337 = vld [vmem:[#allocation7 + $0x1b0] sm:$0xff]
    %v338 = vld [vmem:[#allocation7 + $0x1b8] sm:$0xff]
    %v339 = vld [vmem:[#allocation7 + $0x1c0] sm:$0xff]
    %v340 = vld [vmem:[#allocation7 + $0x1c8] sm:$0xff]
    %v341 = vld [vmem:[#allocation7 + $0x1d0] sm:$0xff]
    %v342 = vld [vmem:[#allocation7 + $0x1d8] sm:$0xff]
    %v343 = vld [vmem:[#allocation7 + $0x1e0] sm:$0xff]
    %v344 = vld [vmem:[#allocation7 + $0x1e8] sm:$0xff]
    %v345 = vld [vmem:[#allocation7 + $0x1f0] sm:$0xff]
    %v346 = vld [vmem:[#allocation7 + $0x1f8] sm:$0xff]
    %347 = vmatprep.subr.mxu0 %v284
    %348 = vmatpush1.msra.mxu0 %v283
    %349 = vmatprep.subr.mxu0 %v288
    %350 = vmatpush1.msra.mxu0 %v287
    %351 = vmatprep.subr.mxu0 %v292
    %352 = vmatpush1.msra.mxu0 %v291
    %353 = vmatprep.subr.mxu0 %v296
    %354 = vmatpush1.msra.mxu0 %v295
    %355 = vmatprep.subr.mxu0 %v300
    %356 = vmatpush1.msra.mxu0 %v299
    %357 = vmatprep.subr.mxu0 %v304
    %358 = vmatpush1.msra.mxu0 %v303
    %359 = vmatprep.subr.mxu0 %v308
    %360 = vmatpush1.msra.mxu0 %v307
    %361 = vmatprep.subr.mxu0 %v312
    %362 = vmatpush1.msra.mxu0 %v311
    %363 = vmatprep.subr.mxu0 %v316
    %364 = vmatpush1.msra.mxu0 %v315
    %365 = vmatprep.subr.mxu0 %v320
    %366 = vmatpush1.msra.mxu0 %v319
    %367 = vmatprep.subr.mxu0 %v324
    %368 = vmatpush1.msra.mxu0 %v323
    %369 = vmatprep.subr.mxu0 %v328
    %370 = vmatpush1.msra.mxu0 %v327
    %371 = vmatprep.subr.mxu0 %v332
    %372 = vmatpush1.msra.mxu0 %v331
    %373 = vmatprep.subr.mxu0 %v336
    %374 = vmatpush1.msra.mxu0 %v335
    %375 = vmatprep.subr.mxu0 %v340
    %376 = vmatpush1.msra.mxu0 %v339
    %377 = vmatprep.subr.mxu0 %v344
    %378 = vmatpush1.msra.mxu0 %v343
    %379 = vmatprep.subr.mxu0 0.0
    %380 = vmatpush1.msra.mxu0 0.0
    %381 = vmatprep.subr.mxu0 0.0
    %382 = vmatpush1.msra.mxu0 0.0
    %383 = vmatprep.subr.mxu0 0.0
    %384 = vmatpush1.msra.mxu0 0.0
    %385 = vmatprep.subr.mxu0 0.0
    %386 = vmatpush1.msra.mxu0 0.0
    %387 = vmatprep.subr.mxu0 0.0
    %388 = vmatpush1.msra.mxu0 0.0
    %389 = vmatprep.subr.mxu0 0.0
    %390 = vmatpush1.msra.mxu0 0.0
    %391 = vmatprep.subr.mxu0 0.0
    %392 = vmatpush1.msra.mxu0 0.0
    %393 = vmatprep.subr.mxu0 0.0
    %394 = vmatpush1.msra.mxu0 0.0
    %395 = vmatprep.subr.mxu0 0.0
    %396 = vmatpush1.msra.mxu0 0.0
    %397 = vmatprep.subr.mxu0 0.0
    %398 = vmatpush1.msra.mxu0 0.0
    %399 = vmatprep.subr.mxu0 0.0
    %400 = vmatpush1.msra.mxu0 0.0
    %401 = vmatprep.subr.mxu0 0.0
    %402 = vmatpush1.msra.mxu0 0.0
    %403 = vmatprep.subr.mxu0 0.0
    %404 = vmatpush1.msra.mxu0 0.0
    %405 = vmatprep.subr.mxu0 0.0
    %406 = vmatpush1.msra.mxu0 0.0
    %407 = vmatprep.subr.mxu0 0.0
    %408 = vmatpush1.msra.mxu0 0.0
    %409 = vmatprep.subr.mxu0 0.0
    %410 = vmatpush1.msra.mxu0 0.0
    %411 = vmatprep.mubr.f32.mxu0 0.0
    %412 = vmatmul.mubr.f32.gmra.mrb[0].mxu0 %v280
    %v413 = vpop.f32.mrb[0].mxu0
    %v414 = vadd.f32 0.0, %v413
    %v415 = vpop.f32.mrb[0].mxu0
    %v416 = vadd.f32 0.0, %v415
    %417 = vdwg.mxu0
    %418 = vmatprep.subr.mxu0 %v286
    %419 = vmatpush1.msra.mxu0 %v285
    %420 = vmatprep.subr.mxu0 %v290
    %421 = vmatpush1.msra.mxu0 %v289
    %422 = vmatprep.subr.mxu0 %v294
    %423 = vmatpush1.msra.mxu0 %v293
    %424 = vmatprep.subr.mxu0 %v298
    %425 = vmatpush1.msra.mxu0 %v297
    %426 = vmatprep.subr.mxu0 %v302
    %427 = vmatpush1.msra.mxu0 %v301
    %428 = vmatprep.subr.mxu0 %v306
    %429 = vmatpush1.msra.mxu0 %v305
    %430 = vmatprep.subr.mxu0 %v310
    %431 = vmatpush1.msra.mxu0 %v309
    %432 = vmatprep.subr.mxu0 %v314
    %433 = vmatpush1.msra.mxu0 %v313
    %434 = vmatprep.subr.mxu0 %v318
    %435 = vmatpush1.msra.mxu0 %v317
    %436 = vmatprep.subr.mxu0 %v322
    %437 = vmatpush1.msra.mxu0 %v321
    %438 = vmatprep.subr.mxu0 %v326
    %439 = vmatpush1.msra.mxu0 %v325
    %440 = vmatprep.subr.mxu0 %v330
    %441 = vmatpush1.msra.mxu0 %v329
    %442 = vmatprep.subr.mxu0 %v334
    %443 = vmatpush1.msra.mxu0 %v333
    %444 = vmatprep.subr.mxu0 %v338
    %445 = vmatpush1.msra.mxu0 %v337
    %446 = vmatprep.subr.mxu0 %v342
    %447 = vmatpush1.msra.mxu0 %v341
    %448 = vmatprep.subr.mxu0 %v346
    %449 = vmatpush1.msra.mxu0 %v345
    %450 = vmatprep.subr.mxu0 0.0
    %451 = vmatpush1.msra.mxu0 0.0
    %452 = vmatprep.subr.mxu0 0.0
    %453 = vmatpush1.msra.mxu0 0.0
    %454 = vmatprep.subr.mxu0 0.0
    %455 = vmatpush1.msra.mxu0 0.0
    %456 = vmatprep.subr.mxu0 0.0
    %457 = vmatpush1.msra.mxu0 0.0
    %458 = vmatprep.subr.mxu0 0.0
    %459 = vmatpush1.msra.mxu0 0.0
    %460 = vmatprep.subr.mxu0 0.0
    %461 = vmatpush1.msra.mxu0 0.0
    %462 = vmatprep.subr.mxu0 0.0
    %463 = vmatpush1.msra.mxu0 0.0
    %464 = vmatprep.subr.mxu0 0.0
    %465 = vmatpush1.msra.mxu0 0.0
    %466 = vmatprep.subr.mxu0 0.0
    %467 = vmatpush1.msra.mxu0 0.0
    %468 = vmatprep.subr.mxu0 0.0
    %469 = vmatpush1.msra.mxu0 0.0
    %470 = vmatprep.subr.mxu0 0.0
    %471 = vmatpush1.msra.mxu0 0.0
    %472 = vmatprep.subr.mxu0 0.0
    %473 = vmatpush1.msra.mxu0 0.0
    %474 = vmatprep.subr.mxu0 0.0
    %475 = vmatpush1.msra.mxu0 0.0
    %476 = vmatprep.subr.mxu0 0.0
    %477 = vmatpush1.msra.mxu0 0.0
    %478 = vmatprep.subr.mxu0 0.0
    %479 = vmatpush1.msra.mxu0 0.0
    %480 = vmatprep.subr.mxu0 0.0
    %481 = vmatpush1.msra.mxu0 0.0
    %482 = vmatprep.mubr.f32.mxu0 0.0
    %483 = vmatmul.mubr.f32.gmra.mrb[0].mxu0 %v280
    %v484 = vpop.f32.mrb[0].mxu0
    %v485 = vadd.f32 0.0, %v484
    %v486 = vpop.f32.mrb[0].mxu0
    %v487 = vadd.f32 0.0, %v486
    %488 = vdwg.mxu0
    %v493 = vcombine.low %v414, %v416
    %v494 = vcombine.low %v485, %v487
    %v496 = vunpack.c.l.s4 1966171168
    %v497 = vunpack.c.0.s8 %v496
    %v498 = vlaneseq
    %v499 = vshrl.u32 %v498, 7
    %v500 = vsub.s32 %v497, %v499
    %v501 = vrot.slane %v493, %v500
    %v503 = vunpack.c.l.s4 1966171168
    %v504 = vunpack.c.0.s8 %v503
    %v505 = vlaneseq
    %v506 = vshrl.u32 %v505, 7
    %v507 = vsub.s32 %v504, %v506
    %v508 = vrot.slane %v494, %v507
    %v509 = vcombine.low %v501, %v508
    %v511 = vunpack.c.l.s4 1966171168
    %v512 = vunpack.c.0.s8 %v511
    %v513 = vlaneseq
    %v514 = vshrl.u32 %v513, 7
    %v515 = vsub.s32 %v512, %v514
    %v516 = vrot.slane %v509, %v515
    %v518 = vadd.f32 %v282, %v516
    %v519 = vmul.f32 %v518, 0.5
    %v520 = vtanh.pop %v519
    %v521 = vadd.f32 %v520, 1.0
    %v522 = vmul.f32 %v521, 0.5
    %v524 = vrot.slane %v518, 3
    %v526 = vtanh.pop %v524
    %v528 = vrot.slane %v522, 1
    %v530 = vmul.f32 %v528, %v281
    %v531 = vmul.f32 %v522, %v526
    %v532 = vadd.f32 %v530, %v531
    %v533 = vtanh.pop %v532
    %v534 = vrot.slane %v522, 2
    %v536 = vmul.f32 %v534, %v533
    %537 = vst [vmem:[#allocation3] sm:$0x1] %v536
    %s538 = scalar_lea.vmem [#allocation2], 1
    %v539 = vld [vmem:[%s538] ss:$8 sm:$0xf]
    %v540 = vld [vmem:[#allocation7] sm:$0xff]
    %v541 = vld [vmem:[#allocation7 + $0x8] sm:$0xff]
    %v542 = vld [vmem:[#allocation7 + $0x10] sm:$0xff]
    %v543 = vld [vmem:[#allocation7 + $0x18] sm:$0xff]
    %v544 = vld [vmem:[#allocation7 + $0x20] sm:$0xff]
    %v545 = vld [vmem:[#allocation7 + $0x28] sm:$0xff]
    %v546 = vld [vmem:[#allocation7 + $0x30] sm:$0xff]
    %v547 = vld [vmem:[#allocation7 + $0x38] sm:$0xff]
    %v548 = vld [vmem:[#allocation7 + $0x40] sm:$0xff]
    %v549 = vld [vmem:[#allocation7 + $0x48] sm:$0xff]
    %v550 = vld [vmem:[#allocation7 + $0x50] sm:$0xff]
    %v551 = vld [vmem:[#allocation7 + $0x58] sm:$0xff]
    %v552 = vld [vmem:[#allocation7 + $0x60] sm:$0xff]
    %v553 = vld [vmem:[#allocation7 + $0x68] sm:$0xff]
    %v554 = vld [vmem:[#allocation7 + $0x70] sm:$0xff]
    %v555 = vld [vmem:[#allocation7 + $0x78] sm:$0xff]
    %v556 = vld [vmem:[#allocation7 + $0x80] sm:$0xff]
    %v557 = vld [vmem:[#allocation7 + $0x88] sm:$0xff]
    %v558 = vld [vmem:[#allocation7 + $0x90] sm:$0xff]
    %v559 = vld [vmem:[#allocation7 + $0x98] sm:$0xff]
    %v560 = vld [vmem:[#allocation7 + $0xa0] sm:$0xff]
    %v561 = vld [vmem:[#allocation7 + $0xa8] sm:$0xff]
    %v562 = vld [vmem:[#allocation7 + $0xb0] sm:$0xff]
    %v563 = vld [vmem:[#allocation7 + $0xb8] sm:$0xff]
    %v564 = vld [vmem:[#allocation7 + $0xc0] sm:$0xff]
    %v565 = vld [vmem:[#allocation7 + $0xc8] sm:$0xff]
    %v566 = vld [vmem:[#allocation7 + $0xd0] sm:$0xff]
    %v567 = vld [vmem:[#allocation7 + $0xd8] sm:$0xff]
    %v568 = vld [vmem:[#allocation7 + $0xe0] sm:$0xff]
    %v569 = vld [vmem:[#allocation7 + $0xe8] sm:$0xff]
    %v570 = vld [vmem:[#allocation7 + $0xf0] sm:$0xff]
    %v571 = vld [vmem:[#allocation7 + $0xf8] sm:$0xff]
    %v572 = vld [vmem:[#allocation7 + $0x100] sm:$0xff]
    %v573 = vld [vmem:[#allocation7 + $0x108] sm:$0xff]
    %v574 = vld [vmem:[#allocation7 + $0x110] sm:$0xff]
    %v575 = vld [vmem:[#allocation7 + $0x118] sm:$0xff]
    %v576 = vld [vmem:[#allocation7 + $0x120] sm:$0xff]
    %v577 = vld [vmem:[#allocation7 + $0x128] sm:$0xff]
    %v578 = vld [vmem:[#allocation7 + $0x130] sm:$0xff]
    %v579 = vld [vmem:[#allocation7 + $0x138] sm:$0xff]
    %v580 = vld [vmem:[#allocation7 + $0x140] sm:$0xff]
    %v581 = vld [vmem:[#allocation7 + $0x148] sm:$0xff]
    %v582 = vld [vmem:[#allocation7 + $0x150] sm:$0xff]
    %v583 = vld [vmem:[#allocation7 + $0x158] sm:$0xff]
    %v584 = vld [vmem:[#allocation7 + $0x160] sm:$0xff]
    %v585 = vld [vmem:[#allocation7 + $0x168] sm:$0xff]
    %v586 = vld [vmem:[#allocation7 + $0x170] sm:$0xff]
    %v587 = vld [vmem:[#allocation7 + $0x178] sm:$0xff]
    %v588 = vld [vmem:[#allocation7 + $0x180] sm:$0xff]
    %v589 = vld [vmem:[#allocation7 + $0x188] sm:$0xff]
    %v590 = vld [vmem:[#allocation7 + $0x190] sm:$0xff]
    %v591 = vld [vmem:[#allocation7 + $0x198] sm:$0xff]
    %v592 = vld [vmem:[#allocation7 + $0x1a0] sm:$0xff]
    %v593 = vld [vmem:[#allocation7 + $0x1a8] sm:$0xff]
    %v594 = vld [vmem:[#allocation7 + $0x1b0] sm:$0xff]
    %v595 = vld [vmem:[#allocation7 + $0x1b8] sm:$0xff]
    %v596 = vld [vmem:[#allocation7 + $0x1c0] sm:$0xff]
    %v597 = vld [vmem:[#allocation7 + $0x1c8] sm:$0xff]
    %v598 = vld [vmem:[#allocation7 + $0x1d0] sm:$0xff]
    %v599 = vld [vmem:[#allocation7 + $0x1d8] sm:$0xff]
    %v600 = vld [vmem:[#allocation7 + $0x1e0] sm:$0xff]
    %v601 = vld [vmem:[#allocation7 + $0x1e8] sm:$0xff]
    %v602 = vld [vmem:[#allocation7 + $0x1f0] sm:$0xff]
    %v603 = vld [vmem:[#allocation7 + $0x1f8] sm:$0xff]
    %604 = vmatprep.subr.mxu0 %v541
    %605 = vmatpush1.msra.mxu0 %v540
    %606 = vmatprep.subr.mxu0 %v545
    %607 = vmatpush1.msra.mxu0 %v544
    %608 = vmatprep.subr.mxu0 %v549
    %609 = vmatpush1.msra.mxu0 %v548
    %610 = vmatprep.subr.mxu0 %v553
    %611 = vmatpush1.msra.mxu0 %v552
    %612 = vmatprep.subr.mxu0 %v557
    %613 = vmatpush1.msra.mxu0 %v556
    %614 = vmatprep.subr.mxu0 %v561
    %615 = vmatpush1.msra.mxu0 %v560
    %616 = vmatprep.subr.mxu0 %v565
    %617 = vmatpush1.msra.mxu0 %v564
    %618 = vmatprep.subr.mxu0 %v569
    %619 = vmatpush1.msra.mxu0 %v568
    %620 = vmatprep.subr.mxu0 %v573
    %621 = vmatpush1.msra.mxu0 %v572
    %622 = vmatprep.subr.mxu0 %v577
    %623 = vmatpush1.msra.mxu0 %v576
    %624 = vmatprep.subr.mxu0 %v581
    %625 = vmatpush1.msra.mxu0 %v580
    %626 = vmatprep.subr.mxu0 %v585
    %627 = vmatpush1.msra.mxu0 %v584
    %628 = vmatprep.subr.mxu0 %v589
    %629 = vmatpush1.msra.mxu0 %v588
    %630 = vmatprep.subr.mxu0 %v593
    %631 = vmatpush1.msra.mxu0 %v592
    %632 = vmatprep.subr.mxu0 %v597
    %633 = vmatpush1.msra.mxu0 %v596
    %634 = vmatprep.subr.mxu0 %v601
    %635 = vmatpush1.msra.mxu0 %v600
    %636 = vmatprep.subr.mxu0 0.0
    %637 = vmatpush1.msra.mxu0 0.0
    %638 = vmatprep.subr.mxu0 0.0
    %639 = vmatpush1.msra.mxu0 0.0
    %640 = vmatprep.subr.mxu0 0.0
    %641 = vmatpush1.msra.mxu0 0.0
    %642 = vmatprep.subr.mxu0 0.0
    %643 = vmatpush1.msra.mxu0 0.0
    %644 = vmatprep.subr.mxu0 0.0
    %645 = vmatpush1.msra.mxu0 0.0
    %646 = vmatprep.subr.mxu0 0.0
    %647 = vmatpush1.msra.mxu0 0.0
    %648 = vmatprep.subr.mxu0 0.0
    %649 = vmatpush1.msra.mxu0 0.0
    %650 = vmatprep.subr.mxu0 0.0
    %651 = vmatpush1.msra.mxu0 0.0
    %652 = vmatprep.subr.mxu0 0.0
    %653 = vmatpush1.msra.mxu0 0.0
    %654 = vmatprep.subr.mxu0 0.0
    %655 = vmatpush1.msra.mxu0 0.0
    %656 = vmatprep.subr.mxu0 0.0
    %657 = vmatpush1.msra.mxu0 0.0
    %658 = vmatprep.subr.mxu0 0.0
    %659 = vmatpush1.msra.mxu0 0.0
    %660 = vmatprep.subr.mxu0 0.0
    %661 = vmatpush1.msra.mxu0 0.0
    %662 = vmatprep.subr.mxu0 0.0
    %663 = vmatpush1.msra.mxu0 0.0
    %664 = vmatprep.subr.mxu0 0.0
    %665 = vmatpush1.msra.mxu0 0.0
    %666 = vmatprep.subr.mxu0 0.0
    %667 = vmatpush1.msra.mxu0 0.0
    %668 = vmatprep.mubr.f32.mxu0 0.0
    %669 = vmatmul.mubr.f32.gmra.mrb[0].mxu0 %v536
    %v670 = vpop.f32.mrb[0].mxu0
    %v671 = vadd.f32 0.0, %v670
    %v672 = vpop.f32.mrb[0].mxu0
    %v673 = vadd.f32 0.0, %v672
    %674 = vdwg.mxu0
    %675 = vmatprep.subr.mxu0 %v543
    %676 = vmatpush1.msra.mxu0 %v542
    %677 = vmatprep.subr.mxu0 %v547
    %678 = vmatpush1.msra.mxu0 %v546
    %679 = vmatprep.subr.mxu0 %v551
    %680 = vmatpush1.msra.mxu0 %v550
    %681 = vmatprep.subr.mxu0 %v555
    %682 = vmatpush1.msra.mxu0 %v554
    %683 = vmatprep.subr.mxu0 %v559
    %684 = vmatpush1.msra.mxu0 %v558
    %685 = vmatprep.subr.mxu0 %v563
    %686 = vmatpush1.msra.mxu0 %v562
    %687 = vmatprep.subr.mxu0 %v567
    %688 = vmatpush1.msra.mxu0 %v566
    %689 = vmatprep.subr.mxu0 %v571
    %690 = vmatpush1.msra.mxu0 %v570
    %691 = vmatprep.subr.mxu0 %v575
    %692 = vmatpush1.msra.mxu0 %v574
    %693 = vmatprep.subr.mxu0 %v579
    %694 = vmatpush1.msra.mxu0 %v578
    %695 = vmatprep.subr.mxu0 %v583
    %696 = vmatpush1.msra.mxu0 %v582
    %697 = vmatprep.subr.mxu0 %v587
    %698 = vmatpush1.msra.mxu0 %v586
    %699 = vmatprep.subr.mxu0 %v591
    %700 = vmatpush1.msra.mxu0 %v590
    %701 = vmatprep.subr.mxu0 %v595
    %702 = vmatpush1.msra.mxu0 %v594
    %703 = vmatprep.subr.mxu0 %v599
    %704 = vmatpush1.msra.mxu0 %v598
    %705 = vmatprep.subr.mxu0 %v603
    %706 = vmatpush1.msra.mxu0 %v602
    %707 = vmatprep.subr.mxu0 0.0
    %708 = vmatpush1.msra.mxu0 0.0
    %709 = vmatprep.subr.mxu0 0.0
    %710 = vmatpush1.msra.mxu0 0.0
    %711 = vmatprep.subr.mxu0 0.0
    %712 = vmatpush1.msra.mxu0 0.0
    %713 = vmatprep.subr.mxu0 0.0
    %714 = vmatpush1.msra.mxu0 0.0
    %715 = vmatprep.subr.mxu0 0.0
    %716 = vmatpush1.msra.mxu0 0.0
    %717 = vmatprep.subr.mxu0 0.0
    %718 = vmatpush1.msra.mxu0 0.0
    %719 = vmatprep.subr.mxu0 0.0
    %720 = vmatpush1.msra.mxu0 0.0
    %721 = vmatprep.subr.mxu0 0.0
    %722 = vmatpush1.msra.mxu0 0.0
    %723 = vmatprep.subr.mxu0 0.0
    %724 = vmatpush1.msra.mxu0 0.0
    %725 = vmatprep.subr.mxu0 0.0
    %726 = vmatpush1.msra.mxu0 0.0
    %727 = vmatprep.subr.mxu0 0.0
    %728 = vmatpush1.msra.mxu0 0.0
    %729 = vmatprep.subr.mxu0 0.0
    %730 = vmatpush1.msra.mxu0 0.0
    %731 = vmatprep.subr.mxu0 0.0
    %732 = vmatpush1.msra.mxu0 0.0
    %733 = vmatprep.subr.mxu0 0.0
    %734 = vmatpush1.msra.mxu0 0.0
    %735 = vmatprep.subr.mxu0 0.0
    %736 = vmatpush1.msra.mxu0 0.0
    %737 = vmatprep.subr.mxu0 0.0
    %738 = vmatpush1.msra.mxu0 0.0
    %739 = vmatprep.mubr.f32.mxu0 0.0
    %740 = vmatmul.mubr.f32.gmra.mrb[0].mxu0 %v536
    %v741 = vpop.f32.mrb[0].mxu0
    %v742 = vadd.f32 0.0, %v741
    %v743 = vpop.f32.mrb[0].mxu0
    %v744 = vadd.f32 0.0, %v743
    %745 = vdwg.mxu0
    %v750 = vcombine.low %v671, %v673
    %v751 = vcombine.low %v742, %v744
    %v753 = vunpack.c.l.s4 1966171168
    %v754 = vunpack.c.0.s8 %v753
    %v755 = vlaneseq
    %v756 = vshrl.u32 %v755, 7
    %v757 = vsub.s32 %v754, %v756
    %v758 = vrot.slane %v750, %v757
    %v760 = vunpack.c.l.s4 1966171168
    %v761 = vunpack.c.0.s8 %v760
    %v762 = vlaneseq
    %v763 = vshrl.u32 %v762, 7
    %v764 = vsub.s32 %v761, %v763
    %v765 = vrot.slane %v751, %v764
    %v766 = vcombine.low %v758, %v765
    %v768 = vunpack.c.l.s4 1966171168
    %v769 = vunpack.c.0.s8 %v768
    %v770 = vlaneseq
    %v771 = vshrl.u32 %v770, 7
    %v772 = vsub.s32 %v769, %v771
    %v773 = vrot.slane %v766, %v772
    %v775 = vadd.f32 %v539, %v773
    %v776 = vmul.f32 %v775, 0.5
    %v777 = vtanh.pop %v776
    %v778 = vadd.f32 %v777, 1.0
    %v779 = vmul.f32 %v778, 0.5
    %v781 = vrot.slane %v775, 3
    %v783 = vtanh.pop %v781
    %v785 = vrot.slane %v779, 1
    %v787 = vmul.f32 %v785, %v532
    %v788 = vmul.f32 %v779, %v783
    %v789 = vadd.f32 %v787, %v788
    %v790 = vtanh.pop %v789
    %v791 = vrot.slane %v779, 2
    %v793 = vmul.f32 %v791, %v790
    %794 = vst [vmem:[#allocation3 + $0x1] sm:$0x1] %v793
    %s795 = scalar_lea.vmem [#allocation2], 2
    %v796 = vld [vmem:[%s795] ss:$8 sm:$0xf]
    %v797 = vld [vmem:[#allocation7] sm:$0xff]
    %v798 = vld [vmem:[#allocation7 + $0x8] sm:$0xff]
    %v799 = vld [vmem:[#allocation7 + $0x10] sm:$0xff]
    %v800 = vld [vmem:[#allocation7 + $0x18] sm:$0xff]
    %v801 = vld [vmem:[#allocation7 + $0x20] sm:$0xff]
    %v802 = vld [vmem:[#allocation7 + $0x28] sm:$0xff]
    %v803 = vld [vmem:[#allocation7 + $0x30] sm:$0xff]
    %v804 = vld [vmem:[#allocation7 + $0x38] sm:$0xff]
    %v805 = vld [vmem:[#allocation7 + $0x40] sm:$0xff]
    %v806 = vld [vmem:[#allocation7 + $0x48] sm:$0xff]
    %v807 = vld [vmem:[#allocation7 + $0x50] sm:$0xff]
    %v808 = vld [vmem:[#allocation7 + $0x58] sm:$0xff]
    %v809 = vld [vmem:[#allocation7 + $0x60] sm:$0xff]
    %v810 = vld [vmem:[#allocation7 + $0x68] sm:$0xff]
    %v811 = vld [vmem:[#allocation7 + $0x70] sm:$0xff]
    %v812 = vld [vmem:[#allocation7 + $0x78] sm:$0xff]
    %v813 = vld [vmem:[#allocation7 + $0x80] sm:$0xff]
    %v814 = vld [vmem:[#allocation7 + $0x88] sm:$0xff]
    %v815 = vld [vmem:[#allocation7 + $0x90] sm:$0xff]
    %v816 = vld [vmem:[#allocation7 + $0x98] sm:$0xff]
    %v817 = vld [vmem:[#allocation7 + $0xa0] sm:$0xff]
    %v818 = vld [vmem:[#allocation7 + $0xa8] sm:$0xff]
    %v819 = vld [vmem:[#allocation7 + $0xb0] sm:$0xff]
    %v820 = vld [vmem:[#allocation7 + $0xb8] sm:$0xff]
    %v821 = vld [vmem:[#allocation7 + $0xc0] sm:$0xff]
    %v822 = vld [vmem:[#allocation7 + $0xc8] sm:$0xff]
    %v823 = vld [vmem:[#allocation7 + $0xd0] sm:$0xff]
    %v824 = vld [vmem:[#allocation7 + $0xd8] sm:$0xff]
    %v825 = vld [vmem:[#allocation7 + $0xe0] sm:$0xff]
    %v826 = vld [vmem:[#allocation7 + $0xe8] sm:$0xff]
    %v827 = vld [vmem:[#allocation7 + $0xf0] sm:$0xff]
    %v828 = vld [vmem:[#allocation7 + $0xf8] sm:$0xff]
    %v829 = vld [vmem:[#allocation7 + $0x100] sm:$0xff]
    %v830 = vld [vmem:[#allocation7 + $0x108] sm:$0xff]
    %v831 = vld [vmem:[#allocation7 + $0x110] sm:$0xff]
    %v832 = vld [vmem:[#allocation7 + $0x118] sm:$0xff]
    %v833 = vld [vmem:[#allocation7 + $0x120] sm:$0xff]
    %v834 = vld [vmem:[#allocation7 + $0x128] sm:$0xff]
    %v835 = vld [vmem:[#allocation7 + $0x130] sm:$0xff]
    %v836 = vld [vmem:[#allocation7 + $0x138] sm:$0xff]
    %v837 = vld [vmem:[#allocation7 + $0x140] sm:$0xff]
    %v838 = vld [vmem:[#allocation7 + $0x148] sm:$0xff]
    %v839 = vld [vmem:[#allocation7 + $0x150] sm:$0xff]
    %v840 = vld [vmem:[#allocation7 + $0x158] sm:$0xff]
    %v841 = vld [vmem:[#allocation7 + $0x160] sm:$0xff]
    %v842 = vld [vmem:[#allocation7 + $0x168] sm:$0xff]
    %v843 = vld [vmem:[#allocation7 + $0x170] sm:$0xff]
    %v844 = vld [vmem:[#allocation7 + $0x178] sm:$0xff]
    %v845 = vld [vmem:[#allocation7 + $0x180] sm:$0xff]
    %v846 = vld [vmem:[#allocation7 + $0x188] sm:$0xff]
    %v847 = vld [vmem:[#allocation7 + $0x190] sm:$0xff]
    %v848 = vld [vmem:[#allocation7 + $0x198] sm:$0xff]
    %v849 = vld [vmem:[#allocation7 + $0x1a0] sm:$0xff]
    %v850 = vld [vmem:[#allocation7 + $0x1a8] sm:$0xff]
    %v851 = vld [vmem:[#allocation7 + $0x1b0] sm:$0xff]
    %v852 = vld [vmem:[#allocation7 + $0x1b8] sm:$0xff]
    %v853 = vld [vmem:[#allocation7 + $0x1c0] sm:$0xff]
    %v854 = vld [vmem:[#allocation7 + $0x1c8] sm:$0xff]
    %v855 = vld [vmem:[#allocation7 + $0x1d0] sm:$0xff]
    %v856 = vld [vmem:[#allocation7 + $0x1d8] sm:$0xff]
    %v857 = vld [vmem:[#allocation7 + $0x1e0] sm:$0xff]
    %v858 = vld [vmem:[#allocation7 + $0x1e8] sm:$0xff]
    %v859 = vld [vmem:[#allocation7 + $0x1f0] sm:$0xff]
    %v860 = vld [vmem:[#allocation7 + $0x1f8] sm:$0xff]
    %861 = vmatprep.subr.mxu0 %v798
    %862 = vmatpush1.msra.mxu0 %v797
    %863 = vmatprep.subr.mxu0 %v802
    %864 = vmatpush1.msra.mxu0 %v801
    %865 = vmatprep.subr.mxu0 %v806
    %866 = vmatpush1.msra.mxu0 %v805
    %867 = vmatprep.subr.mxu0 %v810
    %868 = vmatpush1.msra.mxu0 %v809
    %869 = vmatprep.subr.mxu0 %v814
    %870 = vmatpush1.msra.mxu0 %v813
    %871 = vmatprep.subr.mxu0 %v818
    %872 = vmatpush1.msra.mxu0 %v817
    %873 = vmatprep.subr.mxu0 %v822
    %874 = vmatpush1.msra.mxu0 %v821
    %875 = vmatprep.subr.mxu0 %v826
    %876 = vmatpush1.msra.mxu0 %v825
    %877 = vmatprep.subr.mxu0 %v830
    %878 = vmatpush1.msra.mxu0 %v829
    %879 = vmatprep.subr.mxu0 %v834
    %880 = vmatpush1.msra.mxu0 %v833
    %881 = vmatprep.subr.mxu0 %v838
    %882 = vmatpush1.msra.mxu0 %v837
    %883 = vmatprep.subr.mxu0 %v842
    %884 = vmatpush1.msra.mxu0 %v841
    %885 = vmatprep.subr.mxu0 %v846
    %886 = vmatpush1.msra.mxu0 %v845
    %887 = vmatprep.subr.mxu0 %v850
    %888 = vmatpush1.msra.mxu0 %v849
    %889 = vmatprep.subr.mxu0 %v854
    %890 = vmatpush1.msra.mxu0 %v853
    %891 = vmatprep.subr.mxu0 %v858
    %892 = vmatpush1.msra.mxu0 %v857
    %893 = vmatprep.subr.mxu0 0.0
    %894 = vmatpush1.msra.mxu0 0.0
    %895 = vmatprep.subr.mxu0 0.0
    %896 = vmatpush1.msra.mxu0 0.0
    %897 = vmatprep.subr.mxu0 0.0
    %898 = vmatpush1.msra.mxu0 0.0
    %899 = vmatprep.subr.mxu0 0.0
    %900 = vmatpush1.msra.mxu0 0.0
    %901 = vmatprep.subr.mxu0 0.0
    %902 = vmatpush1.msra.mxu0 0.0
    %903 = vmatprep.subr.mxu0 0.0
    %904 = vmatpush1.msra.mxu0 0.0
    %905 = vmatprep.subr.mxu0 0.0
    %906 = vmatpush1.msra.mxu0 0.0
    %907 = vmatprep.subr.mxu0 0.0
    %908 = vmatpush1.msra.mxu0 0.0
    %909 = vmatprep.subr.mxu0 0.0
    %910 = vmatpush1.msra.mxu0 0.0
    %911 = vmatprep.subr.mxu0 0.0
    %912 = vmatpush1.msra.mxu0 0.0
    %913 = vmatprep.subr.mxu0 0.0
    %914 = vmatpush1.msra.mxu0 0.0
    %915 = vmatprep.subr.mxu0 0.0
    %916 = vmatpush1.msra.mxu0 0.0
    %917 = vmatprep.subr.mxu0 0.0
    %918 = vmatpush1.msra.mxu0 0.0
    %919 = vmatprep.subr.mxu0 0.0
    %920 = vmatpush1.msra.mxu0 0.0
    %921 = vmatprep.subr.mxu0 0.0
    %922 = vmatpush1.msra.mxu0 0.0
    %923 = vmatprep.subr.mxu0 0.0
    %924 = vmatpush1.msra.mxu0 0.0
    %925 = vmatprep.mubr.f32.mxu0 0.0
    %926 = vmatmul.mubr.f32.gmra.mrb[0].mxu0 %v793
    %v927 = vpop.f32.mrb[0].mxu0
    %v928 = vadd.f32 0.0, %v927
    %v929 = vpop.f32.mrb[0].mxu0
    %v930 = vadd.f32 0.0, %v929
    %931 = vdwg.mxu0
    %932 = vmatprep.subr.mxu0 %v800
    %933 = vmatpush1.msra.mxu0 %v799
    %934 = vmatprep.subr.mxu0 %v804
    %935 = vmatpush1.msra.mxu0 %v803
    %936 = vmatprep.subr.mxu0 %v808
    %937 = vmatpush1.msra.mxu0 %v807
    %938 = vmatprep.subr.mxu0 %v812
    %939 = vmatpush1.msra.mxu0 %v811
    %940 = vmatprep.subr.mxu0 %v816
    %941 = vmatpush1.msra.mxu0 %v815
    %942 = vmatprep.subr.mxu0 %v820
    %943 = vmatpush1.msra.mxu0 %v819
    %944 = vmatprep.subr.mxu0 %v824
    %945 = vmatpush1.msra.mxu0 %v823
    %946 = vmatprep.subr.mxu0 %v828
    %947 = vmatpush1.msra.mxu0 %v827
    %948 = vmatprep.subr.mxu0 %v832
    %949 = vmatpush1.msra.mxu0 %v831
    %950 = vmatprep.subr.mxu0 %v836
    %951 = vmatpush1.msra.mxu0 %v835
    %952 = vmatprep.subr.mxu0 %v840
    %953 = vmatpush1.msra.mxu0 %v839
    %954 = vmatprep.subr.mxu0 %v844
    %955 = vmatpush1.msra.mxu0 %v843
    %956 = vmatprep.subr.mxu0 %v848
    %957 = vmatpush1.msra.mxu0 %v847
    %958 = vmatprep.subr.mxu0 %v852
    %959 = vmatpush1.msra.mxu0 %v851
    %960 = vmatprep.subr.mxu0 %v856
    %961 = vmatpush1.msra.mxu0 %v855
    %962 = vmatprep.subr.mxu0 %v860
    %963 = vmatpush1.msra.mxu0 %v859
    %964 = vmatprep.subr.mxu0 0.0
    %965 = vmatpush1.msra.mxu0 0.0
    %966 = vmatprep.subr.mxu0 0.0
    %967 = vmatpush1.msra.mxu0 0.0
    %968 = vmatprep.subr.mxu0 0.0
    %969 = vmatpush1.msra.mxu0 0.0
    %970 = vmatprep.subr.mxu0 0.0
    %971 = vmatpush1.msra.mxu0 0.0
    %972 = vmatprep.subr.mxu0 0.0
    %973 = vmatpush1.msra.mxu0 0.0
    %974 = vmatprep.subr.mxu0 0.0
    %975 = vmatpush1.msra.mxu0 0.0
    %976 = vmatprep.subr.mxu0 0.0
    %977 = vmatpush1.msra.mxu0 0.0
    %978 = vmatprep.subr.mxu0 0.0
    %979 = vmatpush1.msra.mxu0 0.0
    %980 = vmatprep.subr.mxu0 0.0
    %981 = vmatpush1.msra.mxu0 0.0
    %982 = vmatprep.subr.mxu0 0.0
    %983 = vmatpush1.msra.mxu0 0.0
    %984 = vmatprep.subr.mxu0 0.0
    %985 = vmatpush1.msra.mxu0 0.0
    %986 = vmatprep.subr.mxu0 0.0
    %987 = vmatpush1.msra.mxu0 0.0
    %988 = vmatprep.subr.mxu0 0.0
    %989 = vmatpush1.msra.mxu0 0.0
    %990 = vmatprep.subr.mxu0 0.0
    %991 = vmatpush1.msra.mxu0 0.0
    %992 = vmatprep.subr.mxu0 0.0
    %993 = vmatpush1.msra.mxu0 0.0
    %994 = vmatprep.subr.mxu0 0.0
    %995 = vmatpush1.msra.mxu0 0.0
    %996 = vmatprep.mubr.f32.mxu0 0.0
    %997 = vmatmul.mubr.f32.gmra.mrb[0].mxu0 %v793
    %v998 = vpop.f32.mrb[0].mxu0
    %v999 = vadd.f32 0.0, %v998
    %v1000 = vpop.f32.mrb[0].mxu0
    %v1001 = vadd.f32 0.0, %v1000
    %1002 = vdwg.mxu0
    %v1007 = vcombine.low %v928, %v930
    %v1008 = vcombine.low %v999, %v1001
    %v1010 = vunpack.c.l.s4 1966171168
    %v1011 = vunpack.c.0.s8 %v1010
    %v1012 = vlaneseq
    %v1013 = vshrl.u32 %v1012, 7
    %v1014 = vsub.s32 %v1011, %v1013
    %v1015 = vrot.slane %v1007, %v1014
    %v1017 = vunpack.c.l.s4 1966171168
    %v1018 = vunpack.c.0.s8 %v1017
    %v1019 = vlaneseq
    %v1020 = vshrl.u32 %v1019, 7
    %v1021 = vsub.s32 %v1018, %v1020
    %v1022 = vrot.slane %v1008, %v1021
    %v1023 = vcombine.low %v1015, %v1022
    %v1025 = vunpack.c.l.s4 1966171168
    %v1026 = vunpack.c.0.s8 %v1025
    %v1027 = vlaneseq
    %v1028 = vshrl.u32 %v1027, 7
    %v1029 = vsub.s32 %v1026, %v1028
    %v1030 = vrot.slane %v1023, %v1029
    %v1032 = vadd.f32 %v796, %v1030
    %v1033 = vmul.f32 %v1032, 0.5
    %v1034 = vtanh.pop %v1033
    %v1035 = vadd.f32 %v1034, 1.0
    %v1036 = vmul.f32 %v1035, 0.5
    %v1038 = vrot.slane %v1032, 3
    %v1040 = vtanh.pop %v1038
    %v1042 = vrot.slane %v1036, 1
    %v1044 = vmul.f32 %v1042, %v789
    %v1045 = vmul.f32 %v1036, %v1040
    %v1046 = vadd.f32 %v1044, %v1045
    %v1047 = vtanh.pop %v1046
    %v1048 = vrot.slane %v1036, 2
    %v1050 = vmul.f32 %v1048, %v1047
    %1051 = vst [vmem:[#allocation3 + $0x2] sm:$0x1] %v1050
    %s1052 = scalar_lea.vmem [#allocation2], 3
    %v1053 = vld [vmem:[%s1052] ss:$8 sm:$0xf]
    %v1054 = vld [vmem:[#allocation7] sm:$0xff]
    %v1055 = vld [vmem:[#allocation7 + $0x8] sm:$0xff]
    %v1056 = vld [vmem:[#allocation7 + $0x10] sm:$0xff]
    %v1057 = vld [vmem:[#allocation7 + $0x18] sm:$0xff]
    %v1058 = vld [vmem:[#allocation7 + $0x20] sm:$0xff]
    %v1059 = vld [vmem:[#allocation7 + $0x28] sm:$0xff]
    %v1060 = vld [vmem:[#allocation7 + $0x30] sm:$0xff]
    %v1061 = vld [vmem:[#allocation7 + $0x38] sm:$0xff]
    %v1062 = vld [vmem:[#allocation7 + $0x40] sm:$0xff]
    %v1063 = vld [vmem:[#allocation7 + $0x48] sm:$0xff]
    %v1064 = vld [vmem:[#allocation7 + $0x50] sm:$0xff]
    %v1065 = vld [vmem:[#allocation7 + $0x58] sm:$0xff]
    %v1066 = vld [vmem:[#allocation7 + $0x60] sm:$0xff]
    %v1067 = vld [vmem:[#allocation7 + $0x68] sm:$0xff]
    %v1068 = vld [vmem:[#allocation7 + $0x70] sm:$0xff]
    %v1069 = vld [vmem:[#allocation7 + $0x78] sm:$0xff]
    %v1070 = vld [vmem:[#allocation7 + $0x80] sm:$0xff]
    %v1071 = vld [vmem:[#allocation7 + $0x88] sm:$0xff]
    %v1072 = vld [vmem:[#allocation7 + $0x90] sm:$0xff]
    %v1073 = vld [vmem:[#allocation7 + $0x98] sm:$0xff]
    %v1074 = vld [vmem:[#allocation7 + $0xa0] sm:$0xff]
    %v1075 = vld [vmem:[#allocation7 + $0xa8] sm:$0xff]
    %v1076 = vld [vmem:[#allocation7 + $0xb0] sm:$0xff]
    %v1077 = vld [vmem:[#allocation7 + $0xb8] sm:$0xff]
    %v1078 = vld [vmem:[#allocation7 + $0xc0] sm:$0xff]
    %v1079 = vld [vmem:[#allocation7 + $0xc8] sm:$0xff]
    %v1080 = vld [vmem:[#allocation7 + $0xd0] sm:$0xff]
    %v1081 = vld [vmem:[#allocation7 + $0xd8] sm:$0xff]
    %v1082 = vld [vmem:[#allocation7 + $0xe0] sm:$0xff]
    %v1083 = vld [vmem:[#allocation7 + $0xe8] sm:$0xff]
    %v1084 = vld [vmem:[#allocation7 + $0xf0] sm:$0xff]
    %v1085 = vld [vmem:[#allocation7 + $0xf8] sm:$0xff]
    %v1086 = vld [vmem:[#allocation7 + $0x100] sm:$0xff]
    %v1087 = vld [vmem:[#allocation7 + $0x108] sm:$0xff]
    %v1088 = vld [vmem:[#allocation7 + $0x110] sm:$0xff]
    %v1089 = vld [vmem:[#allocation7 + $0x118] sm:$0xff]
    %v1090 = vld [vmem:[#allocation7 + $0x120] sm:$0xff]
    %v1091 = vld [vmem:[#allocation7 + $0x128] sm:$0xff]
    %v1092 = vld [vmem:[#allocation7 + $0x130] sm:$0xff]
    %v1093 = vld [vmem:[#allocation7 + $0x138] sm:$0xff]
    %v1094 = vld [vmem:[#allocation7 + $0x140] sm:$0xff]
    %v1095 = vld [vmem:[#allocation7 + $0x148] sm:$0xff]
    %v1096 = vld [vmem:[#allocation7 + $0x150] sm:$0xff]
    %v1097 = vld [vmem:[#allocation7 + $0x158] sm:$0xff]
    %v1098 = vld [vmem:[#allocation7 + $0x160] sm:$0xff]
    %v1099 = vld [vmem:[#allocation7 + $0x168] sm:$0xff]
    %v1100 = vld [vmem:[#allocation7 + $0x170] sm:$0xff]
    %v1101 = vld [vmem:[#allocation7 + $0x178] sm:$0xff]
    %v1102 = vld [vmem:[#allocation7 + $0x180] sm:$0xff]
    %v1103 = vld [vmem:[#allocation7 + $0x188] sm:$0xff]
    %v1104 = vld [vmem:[#allocation7 + $0x190] sm:$0xff]
    %v1105 = vld [vmem:[#allocation7 + $0x198] sm:$0xff]
    %v1106 = vld [vmem:[#allocation7 + $0x1a0] sm:$0xff]
    %v1107 = vld [vmem:[#allocation7 + $0x1a8] sm:$0xff]
    %v1108 = vld [vmem:[#allocation7 + $0x1b0] sm:$0xff]
    %v1109 = vld [vmem:[#allocation7 + $0x1b8] sm:$0xff]
    %v1110 = vld [vmem:[#allocation7 + $0x1c0] sm:$0xff]
    %v1111 = vld [vmem:[#allocation7 + $0x1c8] sm:$0xff]
    %v1112 = vld [vmem:[#allocation7 + $0x1d0] sm:$0xff]
    %v1113 = vld [vmem:[#allocation7 + $0x1d8] sm:$0xff]
    %v1114 = vld [vmem:[#allocation7 + $0x1e0] sm:$0xff]
    %v1115 = vld [vmem:[#allocation7 + $0x1e8] sm:$0xff]
    %v1116 = vld [vmem:[#allocation7 + $0x1f0] sm:$0xff]
    %v1117 = vld [vmem:[#allocation7 + $0x1f8] sm:$0xff]
    %1118 = vmatprep.subr.mxu0 %v1055
    %1119 = vmatpush1.msra.mxu0 %v1054
    %1120 = vmatprep.subr.mxu0 %v1059
    %1121 = vmatpush1.msra.mxu0 %v1058
    %1122 = vmatprep.subr.mxu0 %v1063
    %1123 = vmatpush1.msra.mxu0 %v1062
    %1124 = vmatprep.subr.mxu0 %v1067
    %1125 = vmatpush1.msra.mxu0 %v1066
    %1126 = vmatprep.subr.mxu0 %v1071
    %1127 = vmatpush1.msra.mxu0 %v1070
    %1128 = vmatprep.subr.mxu0 %v1075
    %1129 = vmatpush1.msra.mxu0 %v1074
    %1130 = vmatprep.subr.mxu0 %v1079
    %1131 = vmatpush1.msra.mxu0 %v1078
    %1132 = vmatprep.subr.mxu0 %v1083
    %1133 = vmatpush1.msra.mxu0 %v1082
    %1134 = vmatprep.subr.mxu0 %v1087
    %1135 = vmatpush1.msra.mxu0 %v1086
    %1136 = vmatprep.subr.mxu0 %v1091
    %1137 = vmatpush1.msra.mxu0 %v1090
    %1138 = vmatprep.subr.mxu0 %v1095
    %1139 = vmatpush1.msra.mxu0 %v1094
    %1140 = vmatprep.subr.mxu0 %v1099
    %1141 = vmatpush1.msra.mxu0 %v1098
    %1142 = vmatprep.subr.mxu0 %v1103
    %1143 = vmatpush1.msra.mxu0 %v1102
    %1144 = vmatprep.subr.mxu0 %v1107
    %1145 = vmatpush1.msra.mxu0 %v1106
    %1146 = vmatprep.subr.mxu0 %v1111
    %1147 = vmatpush1.msra.mxu0 %v1110
    %1148 = vmatprep.subr.mxu0 %v1115
    %1149 = vmatpush1.msra.mxu0 %v1114
    %1150 = vmatprep.subr.mxu0 0.0
    %1151 = vmatpush1.msra.mxu0 0.0
    %1152 = vmatprep.subr.mxu0 0.0
    %1153 = vmatpush1.msra.mxu0 0.0
    %1154 = vmatprep.subr.mxu0 0.0
    %1155 = vmatpush1.msra.mxu0 0.0
    %1156 = vmatprep.subr.mxu0 0.0
    %1157 = vmatpush1.msra.mxu0 0.0
    %1158 = vmatprep.subr.mxu0 0.0
    %1159 = vmatpush1.msra.mxu0 0.0
    %1160 = vmatprep.subr.mxu0 0.0
    %1161 = vmatpush1.msra.mxu0 0.0
    %1162 = vmatprep.subr.mxu0 0.0
    %1163 = vmatpush1.msra.mxu0 0.0
    %1164 = vmatprep.subr.mxu0 0.0
    %1165 = vmatpush1.msra.mxu0 0.0
    %1166 = vmatprep.subr.mxu0 0.0
    %1167 = vmatpush1.msra.mxu0 0.0
    %1168 = vmatprep.subr.mxu0 0.0
    %1169 = vmatpush1.msra.mxu0 0.0
    %1170 = vmatprep.subr.mxu0 0.0
    %1171 = vmatpush1.msra.mxu0 0.0
    %1172 = vmatprep.subr.mxu0 0.0
    %1173 = vmatpush1.msra.mxu0 0.0
    %1174 = vmatprep.subr.mxu0 0.0
    %1175 = vmatpush1.msra.mxu0 0.0
    %1176 = vmatprep.subr.mxu0 0.0
    %1177 = vmatpush1.msra.mxu0 0.0
    %1178 = vmatprep.subr.mxu0 0.0
    %1179 = vmatpush1.msra.mxu0 0.0
    %1180 = vmatprep.subr.mxu0 0.0
    %1181 = vmatpush1.msra.mxu0 0.0
    %1182 = vmatprep.mubr.f32.mxu0 0.0
    %1183 = vmatmul.mubr.f32.gmra.mrb[0].mxu0 %v1050
    %v1184 = vpop.f32.mrb[0].mxu0
    %v1185 = vadd.f32 0.0, %v1184
    %v1186 = vpop.f32.mrb[0].mxu0
    %v1187 = vadd.f32 0.0, %v1186
    %1188 = vdwg.mxu0
    %1189 = vmatprep.subr.mxu0 %v1057
    %1190 = vmatpush1.msra.mxu0 %v1056
    %1191 = vmatprep.subr.mxu0 %v1061
    %1192 = vmatpush1.msra.mxu0 %v1060
    %1193 = vmatprep.subr.mxu0 %v1065
    %1194 = vmatpush1.msra.mxu0 %v1064
    %1195 = vmatprep.subr.mxu0 %v1069
    %1196 = vmatpush1.msra.mxu0 %v1068
    %1197 = vmatprep.subr.mxu0 %v1073
    %1198 = vmatpush1.msra.mxu0 %v1072
    %1199 = vmatprep.subr.mxu0 %v1077
    %1200 = vmatpush1.msra.mxu0 %v1076
    %1201 = vmatprep.subr.mxu0 %v1081
    %1202 = vmatpush1.msra.mxu0 %v1080
    %1203 = vmatprep.subr.mxu0 %v1085
    %1204 = vmatpush1.msra.mxu0 %v1084
    %1205 = vmatprep.subr.mxu0 %v1089
    %1206 = vmatpush1.msra.mxu0 %v1088
    %1207 = vmatprep.subr.mxu0 %v1093
    %1208 = vmatpush1.msra.mxu0 %v1092
    %1209 = vmatprep.subr.mxu0 %v1097
    %1210 = vmatpush1.msra.mxu0 %v1096
    %1211 = vmatprep.subr.mxu0 %v1101
    %1212 = vmatpush1.msra.mxu0 %v1100
    %1213 = vmatprep.subr.mxu0 %v1105
    %1214 = vmatpush1.msra.mxu0 %v1104
    %1215 = vmatprep.subr.mxu0 %v1109
    %1216 = vmatpush1.msra.mxu0 %v1108
    %1217 = vmatprep.subr.mxu0 %v1113
    %1218 = vmatpush1.msra.mxu0 %v1112
    %1219 = vmatprep.subr.mxu0 %v1117
    %1220 = vmatpush1.msra.mxu0 %v1116
    %1221 = vmatprep.subr.mxu0 0.0
    %1222 = vmatpush1.msra.mxu0 0.0
    %1223 = vmatprep.subr.mxu0 0.0
    %1224 = vmatpush1.msra.mxu0 0.0
    %1225 = vmatprep.subr.mxu0 0.0
    %1226 = vmatpush1.msra.mxu0 0.0
    %1227 = vmatprep.subr.mxu0 0.0
    %1228 = vmatpush1.msra.mxu0 0.0
    %1229 = vmatprep.subr.mxu0 0.0
    %1230 = vmatpush1.msra.mxu0 0.0
    %1231 = vmatprep.subr.mxu0 0.0
    %1232 = vmatpush1.msra.mxu0 0.0
    %1233 = vmatprep.subr.mxu0 0.0
    %1234 = vmatpush1.msra.mxu0 0.0
    %1235 = vmatprep.subr.mxu0 0.0
    %1236 = vmatpush1.msra.mxu0 0.0
    %1237 = vmatprep.subr.mxu0 0.0
    %1238 = vmatpush1.msra.mxu0 0.0
    %1239 = vmatprep.subr.mxu0 0.0
    %1240 = vmatpush1.msra.mxu0 0.0
    %1241 = vmatprep.subr.mxu0 0.0
    %1242 = vmatpush1.msra.mxu0 0.0
    %1243 = vmatprep.subr.mxu0 0.0
    %1244 = vmatpush1.msra.mxu0 0.0
    %1245 = vmatprep.subr.mxu0 0.0
    %1246 = vmatpush1.msra.mxu0 0.0
    %1247 = vmatprep.subr.mxu0 0.0
    %1248 = vmatpush1.msra.mxu0 0.0
    %1249 = vmatprep.subr.mxu0 0.0
    %1250 = vmatpush1.msra.mxu0 0.0
    %1251 = vmatprep.subr.mxu0 0.0
    %1252 = vmatpush1.msra.mxu0 0.0
    %1253 = vmatprep.mubr.f32.mxu0 0.0
    %1254 = vmatmul.mubr.f32.gmra.mrb[0].mxu0 %v1050
    %v1255 = vpop.f32.mrb[0].mxu0
    %v1256 = vadd.f32 0.0, %v1255
    %v1257 = vpop.f32.mrb[0].mxu0
    %v1258 = vadd.f32 0.0, %v1257
    %1259 = vdwg.mxu0
    %v1264 = vcombine.low %v1185, %v1187
    %v1265 = vcombine.low %v1256, %v1258
    %v1267 = vunpack.c.l.s4 1966171168
    %v1268 = vunpack.c.0.s8 %v1267
    %v1269 = vlaneseq
    %v1270 = vshrl.u32 %v1269, 7
    %v1271 = vsub.s32 %v1268, %v1270
    %v1272 = vrot.slane %v1264, %v1271
    %v1274 = vunpack.c.l.s4 1966171168
    %v1275 = vunpack.c.0.s8 %v1274
    %v1276 = vlaneseq
    %v1277 = vshrl.u32 %v1276, 7
    %v1278 = vsub.s32 %v1275, %v1277
    %v1279 = vrot.slane %v1265, %v1278
    %v1280 = vcombine.low %v1272, %v1279
    %v1282 = vunpack.c.l.s4 1966171168
    %v1283 = vunpack.c.0.s8 %v1282
    %v1284 = vlaneseq
    %v1285 = vshrl.u32 %v1284, 7
    %v1286 = vsub.s32 %v1283, %v1285
    %v1287 = vrot.slane %v1280, %v1286
    %v1289 = vadd.f32 %v1053, %v1287
    %v1290 = vmul.f32 %v1289, 0.5
    %v1291 = vtanh.pop %v1290
    %v1292 = vadd.f32 %v1291, 1.0
    %v1293 = vmul.f32 %v1292, 0.5
    %v1295 = vrot.slane %v1289, 3
    %v1297 = vtanh.pop %v1295
    %v1299 = vrot.slane %v1293, 1
    %v1301 = vmul.f32 %v1299, %v1046
    %v1302 = vmul.f32 %v1293, %v1297
    %v1303 = vadd.f32 %v1301, %v1302
    %v1304 = vtanh.pop %v1303
    %v1305 = vrot.slane %v1293, 2
    %v1307 = vmul.f32 %v1305, %v1304
    %1308 = vst [vmem:[#allocation3 + $0x3] sm:$0x1] %v1307
    %s1309 = scalar_lea.vmem [#allocation2], 4
    %v1310 = vld [vmem:[%s1309] ss:$8 sm:$0xf]
    %v1311 = vld [vmem:[#allocation7] sm:$0xff]
    %v1312 = vld [vmem:[#allocation7 + $0x8] sm:$0xff]
    %v1313 = vld [vmem:[#allocation7 + $0x10] sm:$0xff]
    %v1314 = vld [vmem:[#allocation7 + $0x18] sm:$0xff]
    %v1315 = vld [vmem:[#allocation7 + $0x20] sm:$0xff]
    %v1316 = vld [vmem:[#allocation7 + $0x28] sm:$0xff]
    %v1317 = vld [vmem:[#allocation7 + $0x30] sm:$0xff]
    %v1318 = vld [vmem:[#allocation7 + $0x38] sm:$0xff]
    %v1319 = vld [vmem:[#allocation7 + $0x40] sm:$0xff]
    %v1320 = vld [vmem:[#allocation7 + $0x48] sm:$0xff]
    %v1321 = vld [vmem:[#allocation7 + $0x50] sm:$0xff]
    %v1322 = vld [vmem:[#allocation7 + $0x58] sm:$0xff]
    %v1323 = vld [vmem:[#allocation7 + $0x60] sm:$0xff]
    %v1324 = vld [vmem:[#allocation7 + $0x68] sm:$0xff]
    %v1325 = vld [vmem:[#allocation7 + $0x70] sm:$0xff]
    %v1326 = vld [vmem:[#allocation7 + $0x78] sm:$0xff]
    %v1327 = vld [vmem:[#allocation7 + $0x80] sm:$0xff]
    %v1328 = vld [vmem:[#allocation7 + $0x88] sm:$0xff]
    %v1329 = vld [vmem:[#allocation7 + $0x90] sm:$0xff]
    %v1330 = vld [vmem:[#allocation7 + $0x98] sm:$0xff]
    %v1331 = vld [vmem:[#allocation7 + $0xa0] sm:$0xff]
    %v1332 = vld [vmem:[#allocation7 + $0xa8] sm:$0xff]
    %v1333 = vld [vmem:[#allocation7 + $0xb0] sm:$0xff]
    %v1334 = vld [vmem:[#allocation7 + $0xb8] sm:$0xff]
    %v1335 = vld [vmem:[#allocation7 + $0xc0] sm:$0xff]
    %v1336 = vld [vmem:[#allocation7 + $0xc8] sm:$0xff]
    %v1337 = vld [vmem:[#allocation7 + $0xd0] sm:$0xff]
    %v1338 = vld [vmem:[#allocation7 + $0xd8] sm:$0xff]
    %v1339 = vld [vmem:[#allocation7 + $0xe0] sm:$0xff]
    %v1340 = vld [vmem:[#allocation7 + $0xe8] sm:$0xff]
    %v1341 = vld [vmem:[#allocation7 + $0xf0] sm:$0xff]
    %v1342 = vld [vmem:[#allocation7 + $0xf8] sm:$0xff]
    %v1343 = vld [vmem:[#allocation7 + $0x100] sm:$0xff]
    %v1344 = vld [vmem:[#allocation7 + $0x108] sm:$0xff]
    %v1345 = vld [vmem:[#allocation7 + $0x110] sm:$0xff]
    %v1346 = vld [vmem:[#allocation7 + $0x118] sm:$0xff]
    %v1347 = vld [vmem:[#allocation7 + $0x120] sm:$0xff]
    %v1348 = vld [vmem:[#allocation7 + $0x128] sm:$0xff]
    %v1349 = vld [vmem:[#allocation7 + $0x130] sm:$0xff]
    %v1350 = vld [vmem:[#allocation7 + $0x138] sm:$0xff]
    %v1351 = vld [vmem:[#allocation7 + $0x140] sm:$0xff]
    %v1352 = vld [vmem:[#allocation7 + $0x148] sm:$0xff]
    %v1353 = vld [vmem:[#allocation7 + $0x150] sm:$0xff]
    %v1354 = vld [vmem:[#allocation7 + $0x158] sm:$0xff]
    %v1355 = vld [vmem:[#allocation7 + $0x160] sm:$0xff]
    %v1356 = vld [vmem:[#allocation7 + $0x168] sm:$0xff]
    %v1357 = vld [vmem:[#allocation7 + $0x170] sm:$0xff]
    %v1358 = vld [vmem:[#allocation7 + $0x178] sm:$0xff]
    %v1359 = vld [vmem:[#allocation7 + $0x180] sm:$0xff]
    %v1360 = vld [vmem:[#allocation7 + $0x188] sm:$0xff]
    %v1361 = vld [vmem:[#allocation7 + $0x190] sm:$0xff]
    %v1362 = vld [vmem:[#allocation7 + $0x198] sm:$0xff]
    %v1363 = vld [vmem:[#allocation7 + $0x1a0] sm:$0xff]
    %v1364 = vld [vmem:[#allocation7 + $0x1a8] sm:$0xff]
    %v1365 = vld [vmem:[#allocation7 + $0x1b0] sm:$0xff]
    %v1366 = vld [vmem:[#allocation7 + $0x1b8] sm:$0xff]
    %v1367 = vld [vmem:[#allocation7 + $0x1c0] sm:$0xff]
    %v1368 = vld [vmem:[#allocation7 + $0x1c8] sm:$0xff]
    %v1369 = vld [vmem:[#allocation7 + $0x1d0] sm:$0xff]
    %v1370 = vld [vmem:[#allocation7 + $0x1d8] sm:$0xff]
    %v1371 = vld [vmem:[#allocation7 + $0x1e0] sm:$0xff]
    %v1372 = vld [vmem:[#allocation7 + $0x1e8] sm:$0xff]
    %v1373 = vld [vmem:[#allocation7 + $0x1f0] sm:$0xff]
    %v1374 = vld [vmem:[#allocation7 + $0x1f8] sm:$0xff]
    %1375 = vmatprep.subr.mxu0 %v1312
    %1376 = vmatpush1.msra.mxu0 %v1311
    %1377 = vmatprep.subr.mxu0 %v1316
    %1378 = vmatpush1.msra.mxu0 %v1315
    %1379 = vmatprep.subr.mxu0 %v1320
    %1380 = vmatpush1.msra.mxu0 %v1319
    %1381 = vmatprep.subr.mxu0 %v1324
    %1382 = vmatpush1.msra.mxu0 %v1323
    %1383 = vmatprep.subr.mxu0 %v1328
    %1384 = vmatpush1.msra.mxu0 %v1327
    %1385 = vmatprep.subr.mxu0 %v1332
    %1386 = vmatpush1.msra.mxu0 %v1331
    %1387 = vmatprep.subr.mxu0 %v1336
    %1388 = vmatpush1.msra.mxu0 %v1335
    %1389 = vmatprep.subr.mxu0 %v1340
    %1390 = vmatpush1.msra.mxu0 %v1339
    %1391 = vmatprep.subr.mxu0 %v1344
    %1392 = vmatpush1.msra.mxu0 %v1343
    %1393 = vmatprep.subr.mxu0 %v1348
    %1394 = vmatpush1.msra.mxu0 %v1347
    %1395 = vmatprep.subr.mxu0 %v1352
    %1396 = vmatpush1.msra.mxu0 %v1351
    %1397 = vmatprep.subr.mxu0 %v1356
    %1398 = vmatpush1.msra.mxu0 %v1355
    %1399 = vmatprep.subr.mxu0 %v1360
    %1400 = vmatpush1.msra.mxu0 %v1359
    %1401 = vmatprep.subr.mxu0 %v1364
    %1402 = vmatpush1.msra.mxu0 %v1363
    %1403 = vmatprep.subr.mxu0 %v1368
    %1404 = vmatpush1.msra.mxu0 %v1367
    %1405 = vmatprep.subr.mxu0 %v1372
    %1406 = vmatpush1.msra.mxu0 %v1371
    %1407 = vmatprep.subr.mxu0 0.0
    %1408 = vmatpush1.msra.mxu0 0.0
    %1409 = vmatprep.subr.mxu0 0.0
    %1410 = vmatpush1.msra.mxu0 0.0
    %1411 = vmatprep.subr.mxu0 0.0
    %1412 = vmatpush1.msra.mxu0 0.0
    %1413 = vmatprep.subr.mxu0 0.0
    %1414 = vmatpush1.msra.mxu0 0.0
    %1415 = vmatprep.subr.mxu0 0.0
    %1416 = vmatpush1.msra.mxu0 0.0
    %1417 = vmatprep.subr.mxu0 0.0
    %1418 = vmatpush1.msra.mxu0 0.0
    %1419 = vmatprep.subr.mxu0 0.0
    %1420 = vmatpush1.msra.mxu0 0.0
    %1421 = vmatprep.subr.mxu0 0.0
    %1422 = vmatpush1.msra.mxu0 0.0
    %1423 = vmatprep.subr.mxu0 0.0
    %1424 = vmatpush1.msra.mxu0 0.0
    %1425 = vmatprep.subr.mxu0 0.0
    %1426 = vmatpush1.msra.mxu0 0.0
    %1427 = vmatprep.subr.mxu0 0.0
    %1428 = vmatpush1.msra.mxu0 0.0
    %1429 = vmatprep.subr.mxu0 0.0
    %1430 = vmatpush1.msra.mxu0 0.0
    %1431 = vmatprep.subr.mxu0 0.0
    %1432 = vmatpush1.msra.mxu0 0.0
    %1433 = vmatprep.subr.mxu0 0.0
    %1434 = vmatpush1.msra.mxu0 0.0
    %1435 = vmatprep.subr.mxu0 0.0
    %1436 = vmatpush1.msra.mxu0 0.0
    %1437 = vmatprep.subr.mxu0 0.0
    %1438 = vmatpush1.msra.mxu0 0.0
    %1439 = vmatprep.mubr.f32.mxu0 0.0
    %1440 = vmatmul.mubr.f32.gmra.mrb[0].mxu0 %v1307
    %v1441 = vpop.f32.mrb[0].mxu0
    %v1442 = vadd.f32 0.0, %v1441
    %v1443 = vpop.f32.mrb[0].mxu0
    %v1444 = vadd.f32 0.0, %v1443
    %1445 = vdwg.mxu0
    %1446 = vmatprep.subr.mxu0 %v1314
    %1447 = vmatpush1.msra.mxu0 %v1313
    %1448 = vmatprep.subr.mxu0 %v1318
    %1449 = vmatpush1.msra.mxu0 %v1317
    %1450 = vmatprep.subr.mxu0 %v1322
    %1451 = vmatpush1.msra.mxu0 %v1321
    %1452 = vmatprep.subr.mxu0 %v1326
    %1453 = vmatpush1.msra.mxu0 %v1325
    %1454 = vmatprep.subr.mxu0 %v1330
    %1455 = vmatpush1.msra.mxu0 %v1329
    %1456 = vmatprep.subr.mxu0 %v1334
    %1457 = vmatpush1.msra.mxu0 %v1333
    %1458 = vmatprep.subr.mxu0 %v1338
    %1459 = vmatpush1.msra.mxu0 %v1337
    %1460 = vmatprep.subr.mxu0 %v1342
    %1461 = vmatpush1.msra.mxu0 %v1341
    %1462 = vmatprep.subr.mxu0 %v1346
    %1463 = vmatpush1.msra.mxu0 %v1345
    %1464 = vmatprep.subr.mxu0 %v1350
    %1465 = vmatpush1.msra.mxu0 %v1349
    %1466 = vmatprep.subr.mxu0 %v1354
    %1467 = vmatpush1.msra.mxu0 %v1353
    %1468 = vmatprep.subr.mxu0 %v1358
    %1469 = vmatpush1.msra.mxu0 %v1357
    %1470 = vmatprep.subr.mxu0 %v1362
    %1471 = vmatpush1.msra.mxu0 %v1361
    %1472 = vmatprep.subr.mxu0 %v1366
    %1473 = vmatpush1.msra.mxu0 %v1365
    %1474 = vmatprep.subr.mxu0 %v1370
    %1475 = vmatpush1.msra.mxu0 %v1369
    %1476 = vmatprep.subr.mxu0 %v1374
    %1477 = vmatpush1.msra.mxu0 %v1373
    %1478 = vmatprep.subr.mxu0 0.0
    %1479 = vmatpush1.msra.mxu0 0.0
    %1480 = vmatprep.subr.mxu0 0.0
    %1481 = vmatpush1.msra.mxu0 0.0
    %1482 = vmatprep.subr.mxu0 0.0
    %1483 = vmatpush1.msra.mxu0 0.0
    %1484 = vmatprep.subr.mxu0 0.0
    %1485 = vmatpush1.msra.mxu0 0.0
    %1486 = vmatprep.subr.mxu0 0.0
    %1487 = vmatpush1.msra.mxu0 0.0
    %1488 = vmatprep.subr.mxu0 0.0
    %1489 = vmatpush1.msra.mxu0 0.0
    %1490 = vmatprep.subr.mxu0 0.0
    %1491 = vmatpush1.msra.mxu0 0.0
    %1492 = vmatprep.subr.mxu0 0.0
    %1493 = vmatpush1.msra.mxu0 0.0
    %1494 = vmatprep.subr.mxu0 0.0
    %1495 = vmatpush1.msra.mxu0 0.0
    %1496 = vmatprep.subr.mxu0 0.0
    %1497 = vmatpush1.msra.mxu0 0.0
    %1498 = vmatprep.subr.mxu0 0.0
    %1499 = vmatpush1.msra.mxu0 0.0
    %1500 = vmatprep.subr.mxu0 0.0
    %1501 = vmatpush1.msra.mxu0 0.0
    %1502 = vmatprep.subr.mxu0 0.0
    %1503 = vmatpush1.msra.mxu0 0.0
    %1504 = vmatprep.subr.mxu0 0.0
    %1505 = vmatpush1.msra.mxu0 0.0
    %1506 = vmatprep.subr.mxu0 0.0
    %1507 = vmatpush1.msra.mxu0 0.0
    %1508 = vmatprep.subr.mxu0 0.0
    %1509 = vmatpush1.msra.mxu0 0.0
    %1510 = vmatprep.mubr.f32.mxu0 0.0
    %1511 = vmatmul.mubr.f32.gmra.mrb[0].mxu0 %v1307
    %v1512 = vpop.f32.mrb[0].mxu0
    %v1513 = vadd.f32 0.0, %v1512
    %v1514 = vpop.f32.mrb[0].mxu0
    %v1515 = vadd.f32 0.0, %v1514
    %1516 = vdwg.mxu0
    %v1521 = vcombine.low %v1442, %v1444
    %v1522 = vcombine.low %v1513, %v1515
    %v1524 = vunpack.c.l.s4 1966171168
    %v1525 = vunpack.c.0.s8 %v1524
    %v1526 = vlaneseq
    %v1527 = vshrl.u32 %v1526, 7
    %v1528 = vsub.s32 %v1525, %v1527
    %v1529 = vrot.slane %v1521, %v1528
    %v1531 = vunpack.c.l.s4 1966171168
    %v1532 = vunpack.c.0.s8 %v1531
    %v1533 = vlaneseq
    %v1534 = vshrl.u32 %v1533, 7
    %v1535 = vsub.s32 %v1532, %v1534
    %v1536 = vrot.slane %v1522, %v1535
    %v1537 = vcombine.low %v1529, %v1536
    %v1539 = vunpack.c.l.s4 1966171168
    %v1540 = vunpack.c.0.s8 %v1539
    %v1541 = vlaneseq
    %v1542 = vshrl.u32 %v1541, 7
    %v1543 = vsub.s32 %v1540, %v1542
    %v1544 = vrot.slane %v1537, %v1543
    %v1546 = vadd.f32 %v1310, %v1544
    %v1547 = vmul.f32 %v1546, 0.5
    %v1548 = vtanh.pop %v1547
    %v1549 = vadd.f32 %v1548, 1.0
    %v1550 = vmul.f32 %v1549, 0.5
    %v1552 = vrot.slane %v1546, 3
    %v1554 = vtanh.pop %v1552
    %v1556 = vrot.slane %v1550, 1
    %v1558 = vmul.f32 %v1556, %v1303
    %v1559 = vmul.f32 %v1550, %v1554
    %v1560 = vadd.f32 %v1558, %v1559
    %v1561 = vtanh.pop %v1560
    %v1562 = vrot.slane %v1550, 2
    %v1564 = vmul.f32 %v1562, %v1561
    %1565 = vst [vmem:[#allocation3 + $0x4] sm:$0x1] %v1564
    %s1566 = scalar_lea.vmem [#allocation2], 5
    %v1567 = vld [vmem:[%s1566] ss:$8 sm:$0xf]
    %v1568 = vld [vmem:[#allocation7] sm:$0xff]
    %v1569 = vld [vmem:[#allocation7 + $0x8] sm:$0xff]
    %v1570 = vld [vmem:[#allocation7 + $0x10] sm:$0xff]
    %v1571 = vld [vmem:[#allocation7 + $0x18] sm:$0xff]
    %v1572 = vld [vmem:[#allocation7 + $0x20] sm:$0xff]
    %v1573 = vld [vmem:[#allocation7 + $0x28] sm:$0xff]
    %v1574 = vld [vmem:[#allocation7 + $0x30] sm:$0xff]
    %v1575 = vld [vmem:[#allocation7 + $0x38] sm:$0xff]
    %v1576 = vld [vmem:[#allocation7 + $0x40] sm:$0xff]
    %v1577 = vld [vmem:[#allocation7 + $0x48] sm:$0xff]
    %v1578 = vld [vmem:[#allocation7 + $0x50] sm:$0xff]
    %v1579 = vld [vmem:[#allocation7 + $0x58] sm:$0xff]
    %v1580 = vld [vmem:[#allocation7 + $0x60] sm:$0xff]
    %v1581 = vld [vmem:[#allocation7 + $0x68] sm:$0xff]
    %v1582 = vld [vmem:[#allocation7 + $0x70] sm:$0xff]
    %v1583 = vld [vmem:[#allocation7 + $0x78] sm:$0xff]
    %v1584 = vld [vmem:[#allocation7 + $0x80] sm:$0xff]
    %v1585 = vld [vmem:[#allocation7 + $0x88] sm:$0xff]
    %v1586 = vld [vmem:[#allocation7 + $0x90] sm:$0xff]
    %v1587 = vld [vmem:[#allocation7 + $0x98] sm:$0xff]
    %v1588 = vld [vmem:[#allocation7 + $0xa0] sm:$0xff]
    %v1589 = vld [vmem:[#allocation7 + $0xa8] sm:$0xff]
    %v1590 = vld [vmem:[#allocation7 + $0xb0] sm:$0xff]
    %v1591 = vld [vmem:[#allocation7 + $0xb8] sm:$0xff]
    %v1592 = vld [vmem:[#allocation7 + $0xc0] sm:$0xff]
    %v1593 = vld [vmem:[#allocation7 + $0xc8] sm:$0xff]
    %v1594 = vld [vmem:[#allocation7 + $0xd0] sm:$0xff]
    %v1595 = vld [vmem:[#allocation7 + $0xd8] sm:$0xff]
    %v1596 = vld [vmem:[#allocation7 + $0xe0] sm:$0xff]
    %v1597 = vld [vmem:[#allocation7 + $0xe8] sm:$0xff]
    %v1598 = vld [vmem:[#allocation7 + $0xf0] sm:$0xff]
    %v1599 = vld [vmem:[#allocation7 + $0xf8] sm:$0xff]
    %v1600 = vld [vmem:[#allocation7 + $0x100] sm:$0xff]
    %v1601 = vld [vmem:[#allocation7 + $0x108] sm:$0xff]
    %v1602 = vld [vmem:[#allocation7 + $0x110] sm:$0xff]
    %v1603 = vld [vmem:[#allocation7 + $0x118] sm:$0xff]
    %v1604 = vld [vmem:[#allocation7 + $0x120] sm:$0xff]
    %v1605 = vld [vmem:[#allocation7 + $0x128] sm:$0xff]
    %v1606 = vld [vmem:[#allocation7 + $0x130] sm:$0xff]
    %v1607 = vld [vmem:[#allocation7 + $0x138] sm:$0xff]
    %v1608 = vld [vmem:[#allocation7 + $0x140] sm:$0xff]
    %v1609 = vld [vmem:[#allocation7 + $0x148] sm:$0xff]
    %v1610 = vld [vmem:[#allocation7 + $0x150] sm:$0xff]
    %v1611 = vld [vmem:[#allocation7 + $0x158] sm:$0xff]
    %v1612 = vld [vmem:[#allocation7 + $0x160] sm:$0xff]
    %v1613 = vld [vmem:[#allocation7 + $0x168] sm:$0xff]
    %v1614 = vld [vmem:[#allocation7 + $0x170] sm:$0xff]
    %v1615 = vld [vmem:[#allocation7 + $0x178] sm:$0xff]
    %v1616 = vld [vmem:[#allocation7 + $0x180] sm:$0xff]
    %v1617 = vld [vmem:[#allocation7 + $0x188] sm:$0xff]
    %v1618 = vld [vmem:[#allocation7 + $0x190] sm:$0xff]
    %v1619 = vld [vmem:[#allocation7 + $0x198] sm:$0xff]
    %v1620 = vld [vmem:[#allocation7 + $0x1a0] sm:$0xff]
    %v1621 = vld [vmem:[#allocation7 + $0x1a8] sm:$0xff]
    %v1622 = vld [vmem:[#allocation7 + $0x1b0] sm:$0xff]
    %v1623 = vld [vmem:[#allocation7 + $0x1b8] sm:$0xff]
    %v1624 = vld [vmem:[#allocation7 + $0x1c0] sm:$0xff]
    %v1625 = vld [vmem:[#allocation7 + $0x1c8] sm:$0xff]
    %v1626 = vld [vmem:[#allocation7 + $0x1d0] sm:$0xff]
    %v1627 = vld [vmem:[#allocation7 + $0x1d8] sm:$0xff]
    %v1628 = vld [vmem:[#allocation7 + $0x1e0] sm:$0xff]
    %v1629 = vld [vmem:[#allocation7 + $0x1e8] sm:$0xff]
    %v1630 = vld [vmem:[#allocation7 + $0x1f0] sm:$0xff]
    %v1631 = vld [vmem:[#allocation7 + $0x1f8] sm:$0xff]
    %1632 = vmatprep.subr.mxu0 %v1569
    %1633 = vmatpush1.msra.mxu0 %v1568
    %1634 = vmatprep.subr.mxu0 %v1573
    %1635 = vmatpush1.msra.mxu0 %v1572
    %1636 = vmatprep.subr.mxu0 %v1577
    %1637 = vmatpush1.msra.mxu0 %v1576
    %1638 = vmatprep.subr.mxu0 %v1581
    %1639 = vmatpush1.msra.mxu0 %v1580
    %1640 = vmatprep.subr.mxu0 %v1585
    %1641 = vmatpush1.msra.mxu0 %v1584
    %1642 = vmatprep.subr.mxu0 %v1589
    %1643 = vmatpush1.msra.mxu0 %v1588
    %1644 = vmatprep.subr.mxu0 %v1593
    %1645 = vmatpush1.msra.mxu0 %v1592
    %1646 = vmatprep.subr.mxu0 %v1597
    %1647 = vmatpush1.msra.mxu0 %v1596
    %1648 = vmatprep.subr.mxu0 %v1601
    %1649 = vmatpush1.msra.mxu0 %v1600
    %1650 = vmatprep.subr.mxu0 %v1605
    %1651 = vmatpush1.msra.mxu0 %v1604
    %1652 = vmatprep.subr.mxu0 %v1609
    %1653 = vmatpush1.msra.mxu0 %v1608
    %1654 = vmatprep.subr.mxu0 %v1613
    %1655 = vmatpush1.msra.mxu0 %v1612
    %1656 = vmatprep.subr.mxu0 %v1617
    %1657 = vmatpush1.msra.mxu0 %v1616
    %1658 = vmatprep.subr.mxu0 %v1621
    %1659 = vmatpush1.msra.mxu0 %v1620
    %1660 = vmatprep.subr.mxu0 %v1625
    %1661 = vmatpush1.msra.mxu0 %v1624
    %1662 = vmatprep.subr.mxu0 %v1629
    %1663 = vmatpush1.msra.mxu0 %v1628
    %1664 = vmatprep.subr.mxu0 0.0
    %1665 = vmatpush1.msra.mxu0 0.0
    %1666 = vmatprep.subr.mxu0 0.0
    %1667 = vmatpush1.msra.mxu0 0.0
    %1668 = vmatprep.subr.mxu0 0.0
    %1669 = vmatpush1.msra.mxu0 0.0
    %1670 = vmatprep.subr.mxu0 0.0
    %1671 = vmatpush1.msra.mxu0 0.0
    %1672 = vmatprep.subr.mxu0 0.0
    %1673 = vmatpush1.msra.mxu0 0.0
    %1674 = vmatprep.subr.mxu0 0.0
    %1675 = vmatpush1.msra.mxu0 0.0
    %1676 = vmatprep.subr.mxu0 0.0
    %1677 = vmatpush1.msra.mxu0 0.0
    %1678 = vmatprep.subr.mxu0 0.0
    %1679 = vmatpush1.msra.mxu0 0.0
    %1680 = vmatprep.subr.mxu0 0.0
    %1681 = vmatpush1.msra.mxu0 0.0
    %1682 = vmatprep.subr.mxu0 0.0
    %1683 = vmatpush1.msra.mxu0 0.0
    %1684 = vmatprep.subr.mxu0 0.0
    %1685 = vmatpush1.msra.mxu0 0.0
    %1686 = vmatprep.subr.mxu0 0.0
    %1687 = vmatpush1.msra.mxu0 0.0
    %1688 = vmatprep.subr.mxu0 0.0
    %1689 = vmatpush1.msra.mxu0 0.0
    %1690 = vmatprep.subr.mxu0 0.0
    %1691 = vmatpush1.msra.mxu0 0.0
    %1692 = vmatprep.subr.mxu0 0.0
    %1693 = vmatpush1.msra.mxu0 0.0
    %1694 = vmatprep.subr.mxu0 0.0
    %1695 = vmatpush1.msra.mxu0 0.0
    %1696 = vmatprep.mubr.f32.mxu0 0.0
    %1697 = vmatmul.mubr.f32.gmra.mrb[0].mxu0 %v1564
    %v1698 = vpop.f32.mrb[0].mxu0
    %v1699 = vadd.f32 0.0, %v1698
    %v1700 = vpop.f32.mrb[0].mxu0
    %v1701 = vadd.f32 0.0, %v1700
    %1702 = vdwg.mxu0
    %1703 = vmatprep.subr.mxu0 %v1571
    %1704 = vmatpush1.msra.mxu0 %v1570
    %1705 = vmatprep.subr.mxu0 %v1575
    %1706 = vmatpush1.msra.mxu0 %v1574
    %1707 = vmatprep.subr.mxu0 %v1579
    %1708 = vmatpush1.msra.mxu0 %v1578
    %1709 = vmatprep.subr.mxu0 %v1583
    %1710 = vmatpush1.msra.mxu0 %v1582
    %1711 = vmatprep.subr.mxu0 %v1587
    %1712 = vmatpush1.msra.mxu0 %v1586
    %1713 = vmatprep.subr.mxu0 %v1591
    %1714 = vmatpush1.msra.mxu0 %v1590
    %1715 = vmatprep.subr.mxu0 %v1595
    %1716 = vmatpush1.msra.mxu0 %v1594
    %1717 = vmatprep.subr.mxu0 %v1599
    %1718 = vmatpush1.msra.mxu0 %v1598
    %1719 = vmatprep.subr.mxu0 %v1603
    %1720 = vmatpush1.msra.mxu0 %v1602
    %1721 = vmatprep.subr.mxu0 %v1607
    %1722 = vmatpush1.msra.mxu0 %v1606
    %1723 = vmatprep.subr.mxu0 %v1611
    %1724 = vmatpush1.msra.mxu0 %v1610
    %1725 = vmatprep.subr.mxu0 %v1615
    %1726 = vmatpush1.msra.mxu0 %v1614
    %1727 = vmatprep.subr.mxu0 %v1619
    %1728 = vmatpush1.msra.mxu0 %v1618
    %1729 = vmatprep.subr.mxu0 %v1623
    %1730 = vmatpush1.msra.mxu0 %v1622
    %1731 = vmatprep.subr.mxu0 %v1627
    %1732 = vmatpush1.msra.mxu0 %v1626
    %1733 = vmatprep.subr.mxu0 %v1631
    %1734 = vmatpush1.msra.mxu0 %v1630
    %1735 = vmatprep.subr.mxu0 0.0
    %1736 = vmatpush1.msra.mxu0 0.0
    %1737 = vmatprep.subr.mxu0 0.0
    %1738 = vmatpush1.msra.mxu0 0.0
    %1739 = vmatprep.subr.mxu0 0.0
    %1740 = vmatpush1.msra.mxu0 0.0
    %1741 = vmatprep.subr.mxu0 0.0
    %1742 = vmatpush1.msra.mxu0 0.0
    %1743 = vmatprep.subr.mxu0 0.0
    %1744 = vmatpush1.msra.mxu0 0.0
    %1745 = vmatprep.subr.mxu0 0.0
    %1746 = vmatpush1.msra.mxu0 0.0
    %1747 = vmatprep.subr.mxu0 0.0
    %1748 = vmatpush1.msra.mxu0 0.0
    %1749 = vmatprep.subr.mxu0 0.0
    %1750 = vmatpush1.msra.mxu0 0.0
    %1751 = vmatprep.subr.mxu0 0.0
    %1752 = vmatpush1.msra.mxu0 0.0
    %1753 = vmatprep.subr.mxu0 0.0
    %1754 = vmatpush1.msra.mxu0 0.0
    %1755 = vmatprep.subr.mxu0 0.0
    %1756 = vmatpush1.msra.mxu0 0.0
    %1757 = vmatprep.subr.mxu0 0.0
    %1758 = vmatpush1.msra.mxu0 0.0
    %1759 = vmatprep.subr.mxu0 0.0
    %1760 = vmatpush1.msra.mxu0 0.0
    %1761 = vmatprep.subr.mxu0 0.0
    %1762 = vmatpush1.msra.mxu0 0.0
    %1763 = vmatprep.subr.mxu0 0.0
    %1764 = vmatpush1.msra.mxu0 0.0
    %1765 = vmatprep.subr.mxu0 0.0
    %1766 = vmatpush1.msra.mxu0 0.0
    %1767 = vmatprep.mubr.f32.mxu0 0.0
    %1768 = vmatmul.mubr.f32.gmra.mrb[0].mxu0 %v1564
    %v1769 = vpop.f32.mrb[0].mxu0
    %v1770 = vadd.f32 0.0, %v1769
    %v1771 = vpop.f32.mrb[0].mxu0
    %v1772 = vadd.f32 0.0, %v1771
    %1773 = vdwg.mxu0
    %v1778 = vcombine.low %v1699, %v1701
    %v1779 = vcombine.low %v1770, %v1772
    %v1781 = vunpack.c.l.s4 1966171168
    %v1782 = vunpack.c.0.s8 %v1781
    %v1783 = vlaneseq
    %v1784 = vshrl.u32 %v1783, 7
    %v1785 = vsub.s32 %v1782, %v1784
    %v1786 = vrot.slane %v1778, %v1785
    %v1788 = vunpack.c.l.s4 1966171168
    %v1789 = vunpack.c.0.s8 %v1788
    %v1790 = vlaneseq
    %v1791 = vshrl.u32 %v1790, 7
    %v1792 = vsub.s32 %v1789, %v1791
    %v1793 = vrot.slane %v1779, %v1792
    %v1794 = vcombine.low %v1786, %v1793
    %v1796 = vunpack.c.l.s4 1966171168
    %v1797 = vunpack.c.0.s8 %v1796
    %v1798 = vlaneseq
    %v1799 = vshrl.u32 %v1798, 7
    %v1800 = vsub.s32 %v1797, %v1799
    %v1801 = vrot.slane %v1794, %v1800
    %v1803 = vadd.f32 %v1567, %v1801
    %v1804 = vmul.f32 %v1803, 0.5
    %v1805 = vtanh.pop %v1804
    %v1806 = vadd.f32 %v1805, 1.0
    %v1807 = vmul.f32 %v1806, 0.5
    %v1809 = vrot.slane %v1803, 3
    %v1811 = vtanh.pop %v1809
    %v1813 = vrot.slane %v1807, 1
    %v1815 = vmul.f32 %v1813, %v1560
    %v1816 = vmul.f32 %v1807, %v1811
    %v1817 = vadd.f32 %v1815, %v1816
    %v1818 = vtanh.pop %v1817
    %v1819 = vrot.slane %v1807, 2
    %v1821 = vmul.f32 %v1819, %v1818
    %1822 = vst [vmem:[#allocation3 + $0x5] sm:$0x1] %v1821
    %s1823 = scalar_lea.vmem [#allocation2], 6
    %v1824 = vld [vmem:[%s1823] ss:$8 sm:$0xf]
    %v1825 = vld [vmem:[#allocation7] sm:$0xff]
    %v1826 = vld [vmem:[#allocation7 + $0x8] sm:$0xff]
    %v1827 = vld [vmem:[#allocation7 + $0x10] sm:$0xff]
    %v1828 = vld [vmem:[#allocation7 + $0x18] sm:$0xff]
    %v1829 = vld [vmem:[#allocation7 + $0x20] sm:$0xff]
    %v1830 = vld [vmem:[#allocation7 + $0x28] sm:$0xff]
    %v1831 = vld [vmem:[#allocation7 + $0x30] sm:$0xff]
    %v1832 = vld [vmem:[#allocation7 + $0x38] sm:$0xff]
    %v1833 = vld [vmem:[#allocation7 + $0x40] sm:$0xff]
    %v1834 = vld [vmem:[#allocation7 + $0x48] sm:$0xff]
    %v1835 = vld [vmem:[#allocation7 + $0x50] sm:$0xff]
    %v1836 = vld [vmem:[#allocation7 + $0x58] sm:$0xff]
    %v1837 = vld [vmem:[#allocation7 + $0x60] sm:$0xff]
    %v1838 = vld [vmem:[#allocation7 + $0x68] sm:$0xff]
    %v1839 = vld [vmem:[#allocation7 + $0x70] sm:$0xff]
    %v1840 = vld [vmem:[#allocation7 + $0x78] sm:$0xff]
    %v1841 = vld [vmem:[#allocation7 + $0x80] sm:$0xff]
    %v1842 = vld [vmem:[#allocation7 + $0x88] sm:$0xff]
    %v1843 = vld [vmem:[#allocation7 + $0x90] sm:$0xff]
    %v1844 = vld [vmem:[#allocation7 + $0x98] sm:$0xff]
    %v1845 = vld [vmem:[#allocation7 + $0xa0] sm:$0xff]
    %v1846 = vld [vmem:[#allocation7 + $0xa8] sm:$0xff]
    %v1847 = vld [vmem:[#allocation7 + $0xb0] sm:$0xff]
    %v1848 = vld [vmem:[#allocation7 + $0xb8] sm:$0xff]
    %v1849 = vld [vmem:[#allocation7 + $0xc0] sm:$0xff]
    %v1850 = vld [vmem:[#allocation7 + $0xc8] sm:$0xff]
    %v1851 = vld [vmem:[#allocation7 + $0xd0] sm:$0xff]
    %v1852 = vld [vmem:[#allocation7 + $0xd8] sm:$0xff]
    %v1853 = vld [vmem:[#allocation7 + $0xe0] sm:$0xff]
    %v1854 = vld [vmem:[#allocation7 + $0xe8] sm:$0xff]
    %v1855 = vld [vmem:[#allocation7 + $0xf0] sm:$0xff]
    %v1856 = vld [vmem:[#allocation7 + $0xf8] sm:$0xff]
    %v1857 = vld [vmem:[#allocation7 + $0x100] sm:$0xff]
    %v1858 = vld [vmem:[#allocation7 + $0x108] sm:$0xff]
    %v1859 = vld [vmem:[#allocation7 + $0x110] sm:$0xff]
    %v1860 = vld [vmem:[#allocation7 + $0x118] sm:$0xff]
    %v1861 = vld [vmem:[#allocation7 + $0x120] sm:$0xff]
    %v1862 = vld [vmem:[#allocation7 + $0x128] sm:$0xff]
    %v1863 = vld [vmem:[#allocation7 + $0x130] sm:$0xff]
    %v1864 = vld [vmem:[#allocation7 + $0x138] sm:$0xff]
    %v1865 = vld [vmem:[#allocation7 + $0x140] sm:$0xff]
    %v1866 = vld [vmem:[#allocation7 + $0x148] sm:$0xff]
    %v1867 = vld [vmem:[#allocation7 + $0x150] sm:$0xff]
    %v1868 = vld [vmem:[#allocation7 + $0x158] sm:$0xff]
    %v1869 = vld [vmem:[#allocation7 + $0x160] sm:$0xff]
    %v1870 = vld [vmem:[#allocation7 + $0x168] sm:$0xff]
    %v1871 = vld [vmem:[#allocation7 + $0x170] sm:$0xff]
    %v1872 = vld [vmem:[#allocation7 + $0x178] sm:$0xff]
    %v1873 = vld [vmem:[#allocation7 + $0x180] sm:$0xff]
    %v1874 = vld [vmem:[#allocation7 + $0x188] sm:$0xff]
    %v1875 = vld [vmem:[#allocation7 + $0x190] sm:$0xff]
    %v1876 = vld [vmem:[#allocation7 + $0x198] sm:$0xff]
    %v1877 = vld [vmem:[#allocation7 + $0x1a0] sm:$0xff]
    %v1878 = vld [vmem:[#allocation7 + $0x1a8] sm:$0xff]
    %v1879 = vld [vmem:[#allocation7 + $0x1b0] sm:$0xff]
    %v1880 = vld [vmem:[#allocation7 + $0x1b8] sm:$0xff]
    %v1881 = vld [vmem:[#allocation7 + $0x1c0] sm:$0xff]
    %v1882 = vld [vmem:[#allocation7 + $0x1c8] sm:$0xff]
    %v1883 = vld [vmem:[#allocation7 + $0x1d0] sm:$0xff]
    %v1884 = vld [vmem:[#allocation7 + $0x1d8] sm:$0xff]
    %v1885 = vld [vmem:[#allocation7 + $0x1e0] sm:$0xff]
    %v1886 = vld [vmem:[#allocation7 + $0x1e8] sm:$0xff]
    %v1887 = vld [vmem:[#allocation7 + $0x1f0] sm:$0xff]
    %v1888 = vld [vmem:[#allocation7 + $0x1f8] sm:$0xff]
    %1889 = vmatprep.subr.mxu0 %v1826
    %1890 = vmatpush1.msra.mxu0 %v1825
    %1891 = vmatprep.subr.mxu0 %v1830
    %1892 = vmatpush1.msra.mxu0 %v1829
    %1893 = vmatprep.subr.mxu0 %v1834
    %1894 = vmatpush1.msra.mxu0 %v1833
    %1895 = vmatprep.subr.mxu0 %v1838
    %1896 = vmatpush1.msra.mxu0 %v1837
    %1897 = vmatprep.subr.mxu0 %v1842
    %1898 = vmatpush1.msra.mxu0 %v1841
    %1899 = vmatprep.subr.mxu0 %v1846
    %1900 = vmatpush1.msra.mxu0 %v1845
    %1901 = vmatprep.subr.mxu0 %v1850
    %1902 = vmatpush1.msra.mxu0 %v1849
    %1903 = vmatprep.subr.mxu0 %v1854
    %1904 = vmatpush1.msra.mxu0 %v1853
    %1905 = vmatprep.subr.mxu0 %v1858
    %1906 = vmatpush1.msra.mxu0 %v1857
    %1907 = vmatprep.subr.mxu0 %v1862
    %1908 = vmatpush1.msra.mxu0 %v1861
    %1909 = vmatprep.subr.mxu0 %v1866
    %1910 = vmatpush1.msra.mxu0 %v1865
    %1911 = vmatprep.subr.mxu0 %v1870
    %1912 = vmatpush1.msra.mxu0 %v1869
    %1913 = vmatprep.subr.mxu0 %v1874
    %1914 = vmatpush1.msra.mxu0 %v1873
    %1915 = vmatprep.subr.mxu0 %v1878
    %1916 = vmatpush1.msra.mxu0 %v1877
    %1917 = vmatprep.subr.mxu0 %v1882
    %1918 = vmatpush1.msra.mxu0 %v1881
    %1919 = vmatprep.subr.mxu0 %v1886
    %1920 = vmatpush1.msra.mxu0 %v1885
    %1921 = vmatprep.subr.mxu0 0.0
    %1922 = vmatpush1.msra.mxu0 0.0
    %1923 = vmatprep.subr.mxu0 0.0
    %1924 = vmatpush1.msra.mxu0 0.0
    %1925 = vmatprep.subr.mxu0 0.0
    %1926 = vmatpush1.msra.mxu0 0.0
    %1927 = vmatprep.subr.mxu0 0.0
    %1928 = vmatpush1.msra.mxu0 0.0
    %1929 = vmatprep.subr.mxu0 0.0
    %1930 = vmatpush1.msra.mxu0 0.0
    %1931 = vmatprep.subr.mxu0 0.0
    %1932 = vmatpush1.msra.mxu0 0.0
    %1933 = vmatprep.subr.mxu0 0.0
    %1934 = vmatpush1.msra.mxu0 0.0
    %1935 = vmatprep.subr.mxu0 0.0
    %1936 = vmatpush1.msra.mxu0 0.0
    %1937 = vmatprep.subr.mxu0 0.0
    %1938 = vmatpush1.msra.mxu0 0.0
    %1939 = vmatprep.subr.mxu0 0.0
    %1940 = vmatpush1.msra.mxu0 0.0
    %1941 = vmatprep.subr.mxu0 0.0
    %1942 = vmatpush1.msra.mxu0 0.0
    %1943 = vmatprep.subr.mxu0 0.0
    %1944 = vmatpush1.msra.mxu0 0.0
    %1945 = vmatprep.subr.mxu0 0.0
    %1946 = vmatpush1.msra.mxu0 0.0
    %1947 = vmatprep.subr.mxu0 0.0
    %1948 = vmatpush1.msra.mxu0 0.0
    %1949 = vmatprep.subr.mxu0 0.0
    %1950 = vmatpush1.msra.mxu0 0.0
    %1951 = vmatprep.subr.mxu0 0.0
    %1952 = vmatpush1.msra.mxu0 0.0
    %1953 = vmatprep.mubr.f32.mxu0 0.0
    %1954 = vmatmul.mubr.f32.gmra.mrb[0].mxu0 %v1821
    %v1955 = vpop.f32.mrb[0].mxu0
    %v1956 = vadd.f32 0.0, %v1955
    %v1957 = vpop.f32.mrb[0].mxu0
    %v1958 = vadd.f32 0.0, %v1957
    %1959 = vdwg.mxu0
    %1960 = vmatprep.subr.mxu0 %v1828
    %1961 = vmatpush1.msra.mxu0 %v1827
    %1962 = vmatprep.subr.mxu0 %v1832
    %1963 = vmatpush1.msra.mxu0 %v1831
    %1964 = vmatprep.subr.mxu0 %v1836
    %1965 = vmatpush1.msra.mxu0 %v1835
    %1966 = vmatprep.subr.mxu0 %v1840
    %1967 = vmatpush1.msra.mxu0 %v1839
    %1968 = vmatprep.subr.mxu0 %v1844
    %1969 = vmatpush1.msra.mxu0 %v1843
    %1970 = vmatprep.subr.mxu0 %v1848
    %1971 = vmatpush1.msra.mxu0 %v1847
    %1972 = vmatprep.subr.mxu0 %v1852
    %1973 = vmatpush1.msra.mxu0 %v1851
    %1974 = vmatprep.subr.mxu0 %v1856
    %1975 = vmatpush1.msra.mxu0 %v1855
    %1976 = vmatprep.subr.mxu0 %v1860
    %1977 = vmatpush1.msra.mxu0 %v1859
    %1978 = vmatprep.subr.mxu0 %v1864
    %1979 = vmatpush1.msra.mxu0 %v1863
    %1980 = vmatprep.subr.mxu0 %v1868
    %1981 = vmatpush1.msra.mxu0 %v1867
    %1982 = vmatprep.subr.mxu0 %v1872
    %1983 = vmatpush1.msra.mxu0 %v1871
    %1984 = vmatprep.subr.mxu0 %v1876
    %1985 = vmatpush1.msra.mxu0 %v1875
    %1986 = vmatprep.subr.mxu0 %v1880
    %1987 = vmatpush1.msra.mxu0 %v1879
    %1988 = vmatprep.subr.mxu0 %v1884
    %1989 = vmatpush1.msra.mxu0 %v1883
    %1990 = vmatprep.subr.mxu0 %v1888
    %1991 = vmatpush1.msra.mxu0 %v1887
    %1992 = vmatprep.subr.mxu0 0.0
    %1993 = vmatpush1.msra.mxu0 0.0
    %1994 = vmatprep.subr.mxu0 0.0
    %1995 = vmatpush1.msra.mxu0 0.0
    %1996 = vmatprep.subr.mxu0 0.0
    %1997 = vmatpush1.msra.mxu0 0.0
    %1998 = vmatprep.subr.mxu0 0.0
    %1999 = vmatpush1.msra.mxu0 0.0
    %2000 = vmatprep.subr.mxu0 0.0
    %2001 = vmatpush1.msra.mxu0 0.0
    %2002 = vmatprep.subr.mxu0 0.0
    %2003 = vmatpush1.msra.mxu0 0.0
    %2004 = vmatprep.subr.mxu0 0.0
    %2005 = vmatpush1.msra.mxu0 0.0
    %2006 = vmatprep.subr.mxu0 0.0
    %2007 = vmatpush1.msra.mxu0 0.0
    %2008 = vmatprep.subr.mxu0 0.0
    %2009 = vmatpush1.msra.mxu0 0.0
    %2010 = vmatprep.subr.mxu0 0.0
    %2011 = vmatpush1.msra.mxu0 0.0
    %2012 = vmatprep.subr.mxu0 0.0
    %2013 = vmatpush1.msra.mxu0 0.0
    %2014 = vmatprep.subr.mxu0 0.0
    %2015 = vmatpush1.msra.mxu0 0.0
    %2016 = vmatprep.subr.mxu0 0.0
    %2017 = vmatpush1.msra.mxu0 0.0
    %2018 = vmatprep.subr.mxu0 0.0
    %2019 = vmatpush1.msra.mxu0 0.0
    %2020 = vmatprep.subr.mxu0 0.0
    %2021 = vmatpush1.msra.mxu0 0.0
    %2022 = vmatprep.subr.mxu0 0.0
    %2023 = vmatpush1.msra.mxu0 0.0
    %2024 = vmatprep.mubr.f32.mxu0 0.0
    %2025 = vmatmul.mubr.f32.gmra.mrb[0].mxu0 %v1821
    %v2026 = vpop.f32.mrb[0].mxu0
    %v2027 = vadd.f32 0.0, %v2026
    %v2028 = vpop.f32.mrb[0].mxu0
    %v2029 = vadd.f32 0.0, %v2028
    %2030 = vdwg.mxu0
    %v2035 = vcombine.low %v1956, %v1958
    %v2036 = vcombine.low %v2027, %v2029
    %v2038 = vunpack.c.l.s4 1966171168
    %v2039 = vunpack.c.0.s8 %v2038
    %v2040 = vlaneseq
    %v2041 = vshrl.u32 %v2040, 7
    %v2042 = vsub.s32 %v2039, %v2041
    %v2043 = vrot.slane %v2035, %v2042
    %v2045 = vunpack.c.l.s4 1966171168
    %v2046 = vunpack.c.0.s8 %v2045
    %v2047 = vlaneseq
    %v2048 = vshrl.u32 %v2047, 7
    %v2049 = vsub.s32 %v2046, %v2048
    %v2050 = vrot.slane %v2036, %v2049
    %v2051 = vcombine.low %v2043, %v2050
    %v2053 = vunpack.c.l.s4 1966171168
    %v2054 = vunpack.c.0.s8 %v2053
    %v2055 = vlaneseq
    %v2056 = vshrl.u32 %v2055, 7
    %v2057 = vsub.s32 %v2054, %v2056
    %v2058 = vrot.slane %v2051, %v2057
    %v2060 = vadd.f32 %v1824, %v2058
    %v2061 = vmul.f32 %v2060, 0.5
    %v2062 = vtanh.pop %v2061
    %v2063 = vadd.f32 %v2062, 1.0
    %v2064 = vmul.f32 %v2063, 0.5
    %v2066 = vrot.slane %v2060, 3
    %v2068 = vtanh.pop %v2066
    %v2070 = vrot.slane %v2064, 1
    %v2072 = vmul.f32 %v2070, %v1817
    %v2073 = vmul.f32 %v2064, %v2068
    %v2074 = vadd.f32 %v2072, %v2073
    %v2075 = vtanh.pop %v2074
    %v2076 = vrot.slane %v2064, 2
    %v2078 = vmul.f32 %v2076, %v2075
    %2079 = vst [vmem:[#allocation3 + $0x6] sm:$0x1] %v2078
    %s2080 = scalar_lea.vmem [#allocation2], 7
    %v2081 = vld [vmem:[%s2080] ss:$8 sm:$0xf]
    %v2082 = vld [vmem:[#allocation7] sm:$0xff]
    %v2083 = vld [vmem:[#allocation7 + $0x8] sm:$0xff]
    %v2084 = vld [vmem:[#allocation7 + $0x10] sm:$0xff]
    %v2085 = vld [vmem:[#allocation7 + $0x18] sm:$0xff]
    %v2086 = vld [vmem:[#allocation7 + $0x20] sm:$0xff]
    %v2087 = vld [vmem:[#allocation7 + $0x28] sm:$0xff]
    %v2088 = vld [vmem:[#allocation7 + $0x30] sm:$0xff]
    %v2089 = vld [vmem:[#allocation7 + $0x38] sm:$0xff]
    %v2090 = vld [vmem:[#allocation7 + $0x40] sm:$0xff]
    %v2091 = vld [vmem:[#allocation7 + $0x48] sm:$0xff]
    %v2092 = vld [vmem:[#allocation7 + $0x50] sm:$0xff]
    %v2093 = vld [vmem:[#allocation7 + $0x58] sm:$0xff]
    %v2094 = vld [vmem:[#allocation7 + $0x60] sm:$0xff]
    %v2095 = vld [vmem:[#allocation7 + $0x68] sm:$0xff]
    %v2096 = vld [vmem:[#allocation7 + $0x70] sm:$0xff]
    %v2097 = vld [vmem:[#allocation7 + $0x78] sm:$0xff]
    %v2098 = vld [vmem:[#allocation7 + $0x80] sm:$0xff]
    %v2099 = vld [vmem:[#allocation7 + $0x88] sm:$0xff]
    %v2100 = vld [vmem:[#allocation7 + $0x90] sm:$0xff]
    %v2101 = vld [vmem:[#allocation7 + $0x98] sm:$0xff]
    %v2102 = vld [vmem:[#allocation7 + $0xa0] sm:$0xff]
    %v2103 = vld [vmem:[#allocation7 + $0xa8] sm:$0xff]
    %v2104 = vld [vmem:[#allocation7 + $0xb0] sm:$0xff]
    %v2105 = vld [vmem:[#allocation7 + $0xb8] sm:$0xff]
    %v2106 = vld [vmem:[#allocation7 + $0xc0] sm:$0xff]
    %v2107 = vld [vmem:[#allocation7 + $0xc8] sm:$0xff]
    %v2108 = vld [vmem:[#allocation7 + $0xd0] sm:$0xff]
    %v2109 = vld [vmem:[#allocation7 + $0xd8] sm:$0xff]
    %v2110 = vld [vmem:[#allocation7 + $0xe0] sm:$0xff]
    %v2111 = vld [vmem:[#allocation7 + $0xe8] sm:$0xff]
    %v2112 = vld [vmem:[#allocation7 + $0xf0] sm:$0xff]
    %v2113 = vld [vmem:[#allocation7 + $0xf8] sm:$0xff]
    %v2114 = vld [vmem:[#allocation7 + $0x100] sm:$0xff]
    %v2115 = vld [vmem:[#allocation7 + $0x108] sm:$0xff]
    %v2116 = vld [vmem:[#allocation7 + $0x110] sm:$0xff]
    %v2117 = vld [vmem:[#allocation7 + $0x118] sm:$0xff]
    %v2118 = vld [vmem:[#allocation7 + $0x120] sm:$0xff]
    %v2119 = vld [vmem:[#allocation7 + $0x128] sm:$0xff]
    %v2120 = vld [vmem:[#allocation7 + $0x130] sm:$0xff]
    %v2121 = vld [vmem:[#allocation7 + $0x138] sm:$0xff]
    %v2122 = vld [vmem:[#allocation7 + $0x140] sm:$0xff]
    %v2123 = vld [vmem:[#allocation7 + $0x148] sm:$0xff]
    %v2124 = vld [vmem:[#allocation7 + $0x150] sm:$0xff]
    %v2125 = vld [vmem:[#allocation7 + $0x158] sm:$0xff]
    %v2126 = vld [vmem:[#allocation7 + $0x160] sm:$0xff]
    %v2127 = vld [vmem:[#allocation7 + $0x168] sm:$0xff]
    %v2128 = vld [vmem:[#allocation7 + $0x170] sm:$0xff]
    %v2129 = vld [vmem:[#allocation7 + $0x178] sm:$0xff]
    %v2130 = vld [vmem:[#allocation7 + $0x180] sm:$0xff]
    %v2131 = vld [vmem:[#allocation7 + $0x188] sm:$0xff]
    %v2132 = vld [vmem:[#allocation7 + $0x190] sm:$0xff]
    %v2133 = vld [vmem:[#allocation7 + $0x198] sm:$0xff]
    %v2134 = vld [vmem:[#allocation7 + $0x1a0] sm:$0xff]
    %v2135 = vld [vmem:[#allocation7 + $0x1a8] sm:$0xff]
    %v2136 = vld [vmem:[#allocation7 + $0x1b0] sm:$0xff]
    %v2137 = vld [vmem:[#allocation7 + $0x1b8] sm:$0xff]
    %v2138 = vld [vmem:[#allocation7 + $0x1c0] sm:$0xff]
    %v2139 = vld [vmem:[#allocation7 + $0x1c8] sm:$0xff]
    %v2140 = vld [vmem:[#allocation7 + $0x1d0] sm:$0xff]
    %v2141 = vld [vmem:[#allocation7 + $0x1d8] sm:$0xff]
    %v2142 = vld [vmem:[#allocation7 + $0x1e0] sm:$0xff]
    %v2143 = vld [vmem:[#allocation7 + $0x1e8] sm:$0xff]
    %v2144 = vld [vmem:[#allocation7 + $0x1f0] sm:$0xff]
    %v2145 = vld [vmem:[#allocation7 + $0x1f8] sm:$0xff]
    %2146 = vmatprep.subr.mxu0 %v2083
    %2147 = vmatpush1.msra.mxu0 %v2082
    %2148 = vmatprep.subr.mxu0 %v2087
    %2149 = vmatpush1.msra.mxu0 %v2086
    %2150 = vmatprep.subr.mxu0 %v2091
    %2151 = vmatpush1.msra.mxu0 %v2090
    %2152 = vmatprep.subr.mxu0 %v2095
    %2153 = vmatpush1.msra.mxu0 %v2094
    %2154 = vmatprep.subr.mxu0 %v2099
    %2155 = vmatpush1.msra.mxu0 %v2098
    %2156 = vmatprep.subr.mxu0 %v2103
    %2157 = vmatpush1.msra.mxu0 %v2102
    %2158 = vmatprep.subr.mxu0 %v2107
    %2159 = vmatpush1.msra.mxu0 %v2106
    %2160 = vmatprep.subr.mxu0 %v2111
    %2161 = vmatpush1.msra.mxu0 %v2110
    %2162 = vmatprep.subr.mxu0 %v2115
    %2163 = vmatpush1.msra.mxu0 %v2114
    %2164 = vmatprep.subr.mxu0 %v2119
    %2165 = vmatpush1.msra.mxu0 %v2118
    %2166 = vmatprep.subr.mxu0 %v2123
    %2167 = vmatpush1.msra.mxu0 %v2122
    %2168 = vmatprep.subr.mxu0 %v2127
    %2169 = vmatpush1.msra.mxu0 %v2126
    %2170 = vmatprep.subr.mxu0 %v2131
    %2171 = vmatpush1.msra.mxu0 %v2130
    %2172 = vmatprep.subr.mxu0 %v2135
    %2173 = vmatpush1.msra.mxu0 %v2134
    %2174 = vmatprep.subr.mxu0 %v2139
    %2175 = vmatpush1.msra.mxu0 %v2138
    %2176 = vmatprep.subr.mxu0 %v2143
    %2177 = vmatpush1.msra.mxu0 %v2142
    %2178 = vmatprep.subr.mxu0 0.0
    %2179 = vmatpush1.msra.mxu0 0.0
    %2180 = vmatprep.subr.mxu0 0.0
    %2181 = vmatpush1.msra.mxu0 0.0
    %2182 = vmatprep.subr.mxu0 0.0
    %2183 = vmatpush1.msra.mxu0 0.0
    %2184 = vmatprep.subr.mxu0 0.0
    %2185 = vmatpush1.msra.mxu0 0.0
    %2186 = vmatprep.subr.mxu0 0.0
    %2187 = vmatpush1.msra.mxu0 0.0
    %2188 = vmatprep.subr.mxu0 0.0
    %2189 = vmatpush1.msra.mxu0 0.0
    %2190 = vmatprep.subr.mxu0 0.0
    %2191 = vmatpush1.msra.mxu0 0.0
    %2192 = vmatprep.subr.mxu0 0.0
    %2193 = vmatpush1.msra.mxu0 0.0
    %2194 = vmatprep.subr.mxu0 0.0
    %2195 = vmatpush1.msra.mxu0 0.0
    %2196 = vmatprep.subr.mxu0 0.0
    %2197 = vmatpush1.msra.mxu0 0.0
    %2198 = vmatprep.subr.mxu0 0.0
    %2199 = vmatpush1.msra.mxu0 0.0
    %2200 = vmatprep.subr.mxu0 0.0
    %2201 = vmatpush1.msra.mxu0 0.0
    %2202 = vmatprep.subr.mxu0 0.0
    %2203 = vmatpush1.msra.mxu0 0.0
    %2204 = vmatprep.subr.mxu0 0.0
    %2205 = vmatpush1.msra.mxu0 0.0
    %2206 = vmatprep.subr.mxu0 0.0
    %2207 = vmatpush1.msra.mxu0 0.0
    %2208 = vmatprep.subr.mxu0 0.0
    %2209 = vmatpush1.msra.mxu0 0.0
    %2210 = vmatprep.mubr.f32.mxu0 0.0
    %2211 = vmatmul.mubr.f32.gmra.mrb[0].mxu0 %v2078
    %v2212 = vpop.f32.mrb[0].mxu0
    %v2213 = vadd.f32 0.0, %v2212
    %v2214 = vpop.f32.mrb[0].mxu0
    %v2215 = vadd.f32 0.0, %v2214
    %2216 = vdwg.mxu0
    %2217 = vmatprep.subr.mxu0 %v2085
    %2218 = vmatpush1.msra.mxu0 %v2084
    %2219 = vmatprep.subr.mxu0 %v2089
    %2220 = vmatpush1.msra.mxu0 %v2088
    %2221 = vmatprep.subr.mxu0 %v2093
    %2222 = vmatpush1.msra.mxu0 %v2092
    %2223 = vmatprep.subr.mxu0 %v2097
    %2224 = vmatpush1.msra.mxu0 %v2096
    %2225 = vmatprep.subr.mxu0 %v2101
    %2226 = vmatpush1.msra.mxu0 %v2100
    %2227 = vmatprep.subr.mxu0 %v2105
    %2228 = vmatpush1.msra.mxu0 %v2104
    %2229 = vmatprep.subr.mxu0 %v2109
    %2230 = vmatpush1.msra.mxu0 %v2108
    %2231 = vmatprep.subr.mxu0 %v2113
    %2232 = vmatpush1.msra.mxu0 %v2112
    %2233 = vmatprep.subr.mxu0 %v2117
    %2234 = vmatpush1.msra.mxu0 %v2116
    %2235 = vmatprep.subr.mxu0 %v2121
    %2236 = vmatpush1.msra.mxu0 %v2120
    %2237 = vmatprep.subr.mxu0 %v2125
    %2238 = vmatpush1.msra.mxu0 %v2124
    %2239 = vmatprep.subr.mxu0 %v2129
    %2240 = vmatpush1.msra.mxu0 %v2128
    %2241 = vmatprep.subr.mxu0 %v2133
    %2242 = vmatpush1.msra.mxu0 %v2132
    %2243 = vmatprep.subr.mxu0 %v2137
    %2244 = vmatpush1.msra.mxu0 %v2136
    %2245 = vmatprep.subr.mxu0 %v2141
    %2246 = vmatpush1.msra.mxu0 %v2140
    %2247 = vmatprep.subr.mxu0 %v2145
    %2248 = vmatpush1.msra.mxu0 %v2144
    %2249 = vmatprep.subr.mxu0 0.0
    %2250 = vmatpush1.msra.mxu0 0.0
    %2251 = vmatprep.subr.mxu0 0.0
    %2252 = vmatpush1.msra.mxu0 0.0
    %2253 = vmatprep.subr.mxu0 0.0
    %2254 = vmatpush1.msra.mxu0 0.0
    %2255 = vmatprep.subr.mxu0 0.0
    %2256 = vmatpush1.msra.mxu0 0.0
    %2257 = vmatprep.subr.mxu0 0.0
    %2258 = vmatpush1.msra.mxu0 0.0
    %2259 = vmatprep.subr.mxu0 0.0
    %2260 = vmatpush1.msra.mxu0 0.0
    %2261 = vmatprep.subr.mxu0 0.0
    %2262 = vmatpush1.msra.mxu0 0.0
    %2263 = vmatprep.subr.mxu0 0.0
    %2264 = vmatpush1.msra.mxu0 0.0
    %2265 = vmatprep.subr.mxu0 0.0
    %2266 = vmatpush1.msra.mxu0 0.0
    %2267 = vmatprep.subr.mxu0 0.0
    %2268 = vmatpush1.msra.mxu0 0.0
    %2269 = vmatprep.subr.mxu0 0.0
    %2270 = vmatpush1.msra.mxu0 0.0
    %2271 = vmatprep.subr.mxu0 0.0
    %2272 = vmatpush1.msra.mxu0 0.0
    %2273 = vmatprep.subr.mxu0 0.0
    %2274 = vmatpush1.msra.mxu0 0.0
    %2275 = vmatprep.subr.mxu0 0.0
    %2276 = vmatpush1.msra.mxu0 0.0
    %2277 = vmatprep.subr.mxu0 0.0
    %2278 = vmatpush1.msra.mxu0 0.0
    %2279 = vmatprep.subr.mxu0 0.0
    %2280 = vmatpush1.msra.mxu0 0.0
    %2281 = vmatprep.mubr.f32.mxu0 0.0
    %2282 = vmatmul.mubr.f32.gmra.mrb[0].mxu0 %v2078
    %v2283 = vpop.f32.mrb[0].mxu0
    %v2284 = vadd.f32 0.0, %v2283
    %v2285 = vpop.f32.mrb[0].mxu0
    %v2286 = vadd.f32 0.0, %v2285
    %2287 = vdwg.mxu0
    %v2292 = vcombine.low %v2213, %v2215
    %v2293 = vcombine.low %v2284, %v2286
    %v2295 = vunpack.c.l.s4 1966171168
    %v2296 = vunpack.c.0.s8 %v2295
    %v2297 = vlaneseq
    %v2298 = vshrl.u32 %v2297, 7
    %v2299 = vsub.s32 %v2296, %v2298
    %v2300 = vrot.slane %v2292, %v2299
    %v2302 = vunpack.c.l.s4 1966171168
    %v2303 = vunpack.c.0.s8 %v2302
    %v2304 = vlaneseq
    %v2305 = vshrl.u32 %v2304, 7
    %v2306 = vsub.s32 %v2303, %v2305
    %v2307 = vrot.slane %v2293, %v2306
    %v2308 = vcombine.low %v2300, %v2307
    %v2310 = vunpack.c.l.s4 1966171168
    %v2311 = vunpack.c.0.s8 %v2310
    %v2312 = vlaneseq
    %v2313 = vshrl.u32 %v2312, 7
    %v2314 = vsub.s32 %v2311, %v2313
    %v2315 = vrot.slane %v2308, %v2314
    %v2317 = vadd.f32 %v2081, %v2315
    %v2318 = vmul.f32 %v2317, 0.5
    %v2319 = vtanh.pop %v2318
    %v2320 = vadd.f32 %v2319, 1.0
    %v2321 = vmul.f32 %v2320, 0.5
    %v2323 = vrot.slane %v2317, 3
    %v2325 = vtanh.pop %v2323
    %v2327 = vrot.slane %v2321, 1
    %v2329 = vmul.f32 %v2327, %v2074
    %v2330 = vmul.f32 %v2321, %v2325
    %v2331 = vadd.f32 %v2329, %v2330
    %v2332 = vtanh.pop %v2331
    %v2333 = vrot.slane %v2321, 2
    %v2335 = vmul.f32 %v2333, %v2332
    %2336 = vst [vmem:[#allocation3 + $0x7] sm:$0x1] %v2335
    %2337 = vst [vmem:[#allocation10] sm:$0x1] %v2335
    %2338 = vst [vmem:[#allocation12] sm:$0x1] %v2331
    %v2339 = vld [vmem:[#allocation3] sm:$0xff]
    %v2340 = vld [vmem:[%s4] sm:$0xff]
    %v2341 = vld [vmem:[%s4 + $0x8] sm:$0xff]
    %v2342 = vld [vmem:[%s4 + $0x10] sm:$0xff]
    %v2343 = vld [vmem:[%s4 + $0x18] sm:$0xff]
    %v2344 = vld [vmem:[%s4 + $0x20] sm:$0xff]
    %v2345 = vld [vmem:[%s4 + $0x28] sm:$0xff]
    %v2346 = vld [vmem:[%s4 + $0x30] sm:$0xff]
    %v2347 = vld [vmem:[%s4 + $0x38] sm:$0xff]
    %v2348 = vld [vmem:[%s4 + $0x40] sm:$0xff]
    %v2349 = vld [vmem:[%s4 + $0x48] sm:$0xff]
    %v2350 = vld [vmem:[%s4 + $0x50] sm:$0xff]
    %v2351 = vld [vmem:[%s4 + $0x58] sm:$0xff]
    %v2352 = vld [vmem:[%s4 + $0x60] sm:$0xff]
    %v2353 = vld [vmem:[%s4 + $0x68] sm:$0xff]
    %v2354 = vld [vmem:[%s4 + $0x70] sm:$0xff]
    %v2355 = vld [vmem:[%s4 + $0x78] sm:$0xff]
    %v2356 = vld [vmem:[%s5] sm:$0x1]
    %v2358 = vlaneseq
    %v2359 = vshrl.u32 %v2358, 7
    %v2360 = vsub.s32 0, %v2359
    %v2361 = vrot.slane %v2356, %v2360
    %2363 = vmatprep.subr.mxu0 0.0
    %2364 = vmatpush1.msra.mxu0 %v2340
    %2365 = vmatprep.subr.mxu0 0.0
    %2366 = vmatpush1.msra.mxu0 %v2341
    %2367 = vmatprep.subr.mxu0 0.0
    %2368 = vmatpush1.msra.mxu0 %v2342
    %2369 = vmatprep.subr.mxu0 0.0
    %2370 = vmatpush1.msra.mxu0 %v2343
    %2371 = vmatprep.subr.mxu0 0.0
    %2372 = vmatpush1.msra.mxu0 %v2344
    %2373 = vmatprep.subr.mxu0 0.0
    %2374 = vmatpush1.msra.mxu0 %v2345
    %2375 = vmatprep.subr.mxu0 0.0
    %2376 = vmatpush1.msra.mxu0 %v2346
    %2377 = vmatprep.subr.mxu0 0.0
    %2378 = vmatpush1.msra.mxu0 %v2347
    %2379 = vmatprep.subr.mxu0 0.0
    %2380 = vmatpush1.msra.mxu0 %v2348
    %2381 = vmatprep.subr.mxu0 0.0
    %2382 = vmatpush1.msra.mxu0 %v2349
    %2383 = vmatprep.subr.mxu0 0.0
    %2384 = vmatpush1.msra.mxu0 %v2350
    %2385 = vmatprep.subr.mxu0 0.0
    %2386 = vmatpush1.msra.mxu0 %v2351
    %2387 = vmatprep.subr.mxu0 0.0
    %2388 = vmatpush1.msra.mxu0 %v2352
    %2389 = vmatprep.subr.mxu0 0.0
    %2390 = vmatpush1.msra.mxu0 %v2353
    %2391 = vmatprep.subr.mxu0 0.0
    %2392 = vmatpush1.msra.mxu0 %v2354
    %2393 = vmatprep.subr.mxu0 0.0
    %2394 = vmatpush1.msra.mxu0 %v2355
    %2395 = vmatprep.subr.mxu0 0.0
    %2396 = vmatpush1.msra.mxu0 0.0
    %2397 = vmatprep.subr.mxu0 0.0
    %2398 = vmatpush1.msra.mxu0 0.0
    %2399 = vmatprep.subr.mxu0 0.0
    %2400 = vmatpush1.msra.mxu0 0.0
    %2401 = vmatprep.subr.mxu0 0.0
    %2402 = vmatpush1.msra.mxu0 0.0
    %2403 = vmatprep.subr.mxu0 0.0
    %2404 = vmatpush1.msra.mxu0 0.0
    %2405 = vmatprep.subr.mxu0 0.0
    %2406 = vmatpush1.msra.mxu0 0.0
    %2407 = vmatprep.subr.mxu0 0.0
    %2408 = vmatpush1.msra.mxu0 0.0
    %2409 = vmatprep.subr.mxu0 0.0
    %2410 = vmatpush1.msra.mxu0 0.0
    %2411 = vmatprep.subr.mxu0 0.0
    %2412 = vmatpush1.msra.mxu0 0.0
    %2413 = vmatprep.subr.mxu0 0.0
    %2414 = vmatpush1.msra.mxu0 0.0
    %2415 = vmatprep.subr.mxu0 0.0
    %2416 = vmatpush1.msra.mxu0 0.0
    %2417 = vmatprep.subr.mxu0 0.0
    %2418 = vmatpush1.msra.mxu0 0.0
    %2419 = vmatprep.subr.mxu0 0.0
    %2420 = vmatpush1.msra.mxu0 0.0
    %2421 = vmatprep.subr.mxu0 0.0
    %2422 = vmatpush1.msra.mxu0 0.0
    %2423 = vmatprep.subr.mxu0 0.0
    %2424 = vmatpush1.msra.mxu0 0.0
    %2425 = vmatprep.subr.mxu0 0.0
    %2426 = vmatpush1.msra.mxu0 0.0
    %2427 = vmatprep.mubr.f32.mxu0 0.0
    %2428 = vmatmul.mubr.f32.gmra.mrb[0].mxu0 %v2339
    %v2429 = vpop.f32.mrb[0].mxu0
    %v2430 = vadd.f32 %v2361, %v2429
    %v2431 = vpop.f32.mrb[0].mxu0
    %2432 = vdwg.mxu0
    %vm2433 = vcmask 146432
    %v2434 = vsel %vm2433, %v2430, -inf
    %2435 = vmax.xlane.f32.xlu0 %v2434
    %v2436 = vpop.xlane.xlu0 %2435
    %v2437 = vsub.f32 %v2430, %v2436
    %v2438 = vmul.f32 %v2437, 1.442695
    %v2439 = vpow.pop %v2438
    %v2440 = vsel %vm2433, %v2439, 0.0
    %2441 = vadd.xlane.f32.xlu0 %v2440
    %v2442 = vpop.xlane.xlu0 %2441
    %v2443 = vlog2.pop %v2442
    %v2444 = vmul.f32 %v2443, 0.6931472
    %v2445 = vadd.f32 %v2436, %v2444
    %v2446 = vsub.f32 %v2430, %v2445
    %2447 = vst.msk [vmem:[#allocation9] sm:$0xff] %vm2433, %v2446
    // Predicated region
    $region42: #{tpu_custom_call.1} parent=1 // pred_check
      _
    $region43: #{tpu_custom_call.1} parent=1 // pred_check_branch
      %2449 = sbr.rel (0) target = $region45
    $region44: #{tpu_custom_call.1} parent=1 // pred_region
      %s2451 = ssub.s32 128, 128
      %2452 = vsyncadd [#allocation6], %s2451
      %s2454 = sshll.u32 [#allocation9], 4
      %s2455 = int_to_ptr.vmem [resolvable:$true] %s2454
      %2457 = dma.vmem_to_hbm [thread:$0]  %s2455, 128, %s8, [#allocation6]
    $region45: #{tpu_custom_call.1} parent=1 // pred_fallthru
      _
    // Predicated region
    $region46: #{tpu_custom_call.1} parent=1 // pred_check
      _
    $region47: #{tpu_custom_call.1} parent=1 // pred_check_branch
      %2459 = sbr.rel (0) target = $region49
    $region48: #{tpu_custom_call.1} parent=1 // pred_region
      %s2461 = ssub.s32 16, 16
      %2462 = vsyncadd [#allocation11], %s2461
      %s2464 = sshll.u32 [#allocation10], 4
      %s2465 = int_to_ptr.vmem [resolvable:$true] %s2464
      %2467 = dma.vmem_to_hbm [thread:$0]  %s2465, 16, %s9, [#allocation11]
    $region49: #{tpu_custom_call.1} parent=1 // pred_fallthru
      _
    // Predicated region
    $region50: #{tpu_custom_call.1} parent=1 // pred_check
      _
    $region51: #{tpu_custom_call.1} parent=1 // pred_check_branch
      %2469 = sbr.rel (0) target = $region53
    $region52: #{tpu_custom_call.1} parent=1 // pred_region
      %s2471 = ssub.s32 16, 16
      %2472 = vsyncadd [#allocation11], %s2471
      %s2474 = sshll.u32 [#allocation12], 4
      %s2475 = int_to_ptr.vmem [resolvable:$true] %s2474
      %2477 = dma.vmem_to_hbm [thread:$0]  %s2475, 16, %s10, [#allocation11]
    $region53: #{tpu_custom_call.1} parent=1 // pred_fallthru
      _
    // Predicated region
    $region54: #{tpu_custom_call.1} parent=1 // pred_check
      _
    $region55: #{tpu_custom_call.1} parent=1 // pred_check_branch
      %2479 = sbr.rel (0) target = $region57
    $region56: #{tpu_custom_call.1} parent=1 // pred_region
      %2480 = dma.done [#allocation6], 128
    $region57: #{tpu_custom_call.1} parent=1 // pred_fallthru
      _
    // Predicated region
    $region58: #{tpu_custom_call.1} parent=1 // pred_check
      _
    $region59: #{tpu_custom_call.1} parent=1 // pred_check_branch
      %2482 = sbr.rel (0) target = $region61
    $region60: #{tpu_custom_call.1} parent=1 // pred_region
      %2483 = dma.done [#allocation11], 16
    $region61: #{tpu_custom_call.1} parent=1 // pred_fallthru
      _
    // Predicated region
    $region62: #{tpu_custom_call.1} parent=1 // pred_check
      _
    $region63: #{tpu_custom_call.1} parent=1 // pred_check_branch
      %2485 = sbr.rel (0) target = $region65
    $region64: #{tpu_custom_call.1} parent=1 // pred_region
      %2486 = dma.done [#allocation11], 16
    $region65: #{tpu_custom_call.1} parent=1 // pred_fallthru
      _
    %2487 = vsyncpa [#allocation5], 1
    %2488 = vsyncpa [#allocation8], 1
    %2489 = vsyncpa [#allocation6], 1
    %2490 = vsyncpa [#allocation11], 1

</llo_original>
